<compile_context>
chip_gen: v7x
topology: tpu7x:2x2x1
jax: 0.10.0
libtpu: 0.0.40
codegen_flags: <defaults>
</compile_context>

<pallas_src>
import functools
import math

import jax
import jax.numpy as jnp
from jax.experimental import pallas as pl
from jax.experimental.pallas import tpu as pltpu


def _round_up(x, m):
    return ((x + m - 1) // m) * m


# --------------------------------------------------------------------------
# Kernel A: fused QKV projection, emitted head-major and lane-padded.
# --------------------------------------------------------------------------
def qkv_projection_kernel(x_ref, wqkv_ref, bqkv_ref, q_ref, k_ref, v_ref,
                          *, num_heads, dk_pad):
    x = x_ref[0]                                                 # (TS, D_pad) bf16
    qkv = (jnp.dot(x, wqkv_ref[...], preferred_element_type=jnp.float32)
           + bqkv_ref[...]).astype(q_ref.dtype)                  # (TS, 3*H*dk_pad)
    hdk = num_heads * dk_pad
    for h in range(num_heads):              # static loop; 128-aligned slices
        off = h * dk_pad
        q_ref[0, h] = qkv[:, off:off + dk_pad]
        k_ref[0, h] = qkv[:, hdk + off:hdk + off + dk_pad]
        v_ref[0, h] = qkv[:, 2 * hdk + off:2 * hdk + off + dk_pad]


# --------------------------------------------------------------------------
# Kernel B: flash attention over key tiles + output proj + LN1 + FFN + LN2.
# --------------------------------------------------------------------------
def attn_ffn_kernel(x_ref, q_ref, k_ref, v_ref,
                    wo_ref, bo_ref, g1_ref, be1_ref,
                    w1_ref, b1_ref, w2_ref, b2_ref, g2_ref, be2_ref,
                    out_ref,
                    m_scr, l_scr, acc_scr, ctx_scr,
                    *, num_heads, dk_pad, d_model, d_model_pad,
                    dff_pad, ff_chunk, seq_len, key_tile, mask_keys):
    ki = pl.program_id(2)
    n_k = pl.num_programs(2)

    @pl.when(ki == 0)
    def _init():
        m_scr[...] = jnp.full(m_scr.shape, -jnp.inf, m_scr.dtype)
        l_scr[...] = jnp.zeros(l_scr.shape, l_scr.dtype)
        acc_scr[...] = jnp.zeros(acc_scr.shape, acc_scr.dtype)

    # ---- online softmax update for this key tile (heads batched) ----------
    q = q_ref[0]                                   # (H, TQ, dk_pad) bf16 (pre-scaled)
    k = k_ref[0]                                   # (H, TK, dk_pad) bf16
    v = v_ref[0]
    s = jnp.einsum("hqd,hkd->hqk", q, k,
                   preferred_element_type=jnp.float32)          # (H, TQ, TK) f32
    if mask_keys:  # static: only emitted when the sequence was padded
        key_idx = ki * key_tile + jax.lax.broadcasted_iota(jnp.int32, s.shape, 2)
        s = jnp.where(key_idx < seq_len, s, -1e30)

    m_prev = m_scr[...]
    m_new = jnp.maximum(m_prev, jnp.max(s, axis=-1, keepdims=True))
    alpha = jnp.exp(m_prev - m_new)
    p = jnp.exp(s - m_new)
    l_scr[...] = alpha * l_scr[...] + jnp.sum(p, axis=-1, keepdims=True)
    acc_scr[...] = alpha * acc_scr[...] + jnp.einsum(
        "hqk,hkd->hqd", p.astype(v.dtype), v, preferred_element_type=jnp.float32)
    m_scr[...] = m_new

    # ---- epilogue on the last key tile ------------------------------------
    @pl.when(ki == n_k - 1)
    def _epilogue():
        def layernorm(xin, g, b, eps=1e-5):
            # Padded feature columns of xin are exactly zero, so plain sums over
            # D_pad equal sums over the true d_model; divide by the true d_model.
            mu = jnp.sum(xin, axis=-1, keepdims=True) * (1.0 / d_model)
            xc = xin - mu
            if d_model_pad != d_model:  # keep padded cols at 0 (and out of var)
                col = jax.lax.broadcasted_iota(jnp.int32, xin.shape, 1)
                xc = jnp.where(col < d_model, xc, 0.0)
            var = jnp.sum(xc * xc, axis=-1, keepdims=True) * (1.0 / d_model)
            return xc * jax.lax.rsqrt(var + eps) * g + b

        inv_l = 1.0 / l_scr[...]                           # exact; (H, TQ, 1)
        for h in range(num_heads):                         # lane-aligned slab writes
            ctx_scr[:, h * dk_pad:(h + 1) * dk_pad] = (
                acc_scr[h] * inv_l[h]).astype(ctx_scr.dtype)

        attn = (jnp.dot(ctx_scr[...], wo_ref[...],
                        preferred_element_type=jnp.float32) + bo_ref[...])
        x1 = layernorm(x_ref[0].astype(jnp.float32) + attn,
                       g1_ref[...], be1_ref[...])          # (TQ, D_pad) f32

        # ---- FeedForward, chunked over d_ff, bf16 GELU activations --------
        x1b = x1.astype(jnp.bfloat16)
        ff = jnp.zeros_like(x1)
        for c in range(0, dff_pad, ff_chunk):              # static chunk loop
            h1 = (jnp.dot(x1b, w1_ref[:, c:c + ff_chunk],
                          preferred_element_type=jnp.float32)
                  + b1_ref[:, c:c + ff_chunk])
            h1 = jax.nn.gelu(h1, approximate=False).astype(jnp.bfloat16)
            ff = ff + jnp.dot(h1, w2_ref[c:c + ff_chunk, :],
                              preferred_element_type=jnp.float32)

        x2 = layernorm(x1 + ff + b2_ref[...], g2_ref[...], be2_ref[...])
        out_ref[0] = x2.astype(out_ref.dtype)


# --------------------------------------------------------------------------
# Wrapper
# --------------------------------------------------------------------------
def _pick_vmem_limit(working_set_bytes):
    # Generation-aware scoped-VMEM limit: working set + 50% headroom, but never
    # more than ~85% of this chip's physical VMEM (64 MiB/TC on v7x, 128 MiB on
    # v5e/v6e), and at least the 32 MiB default.
    try:
        cap = int(pltpu.get_tpu_info().vmem_capacity_bytes)
    except Exception:  # hardware-info probe only; never masks kernel errors
        cap = 64 * 2 ** 20
    want = int(1.5 * working_set_bytes)
    return int(max(32 * 2 ** 20, min(want, int(0.85 * cap))))


def transformer_block(x, params, num_heads, *, seq_tile=None, ff_chunk=None):
    B, S, D = x.shape
    assert D % num_heads == 0
    d_k = D // num_heads
    d_ff = params["w1"].shape[1]
    f32, bf16 = jnp.float32, jnp.bfloat16

    # ---- padded (lane-dense) sizes ------------------------------------------
    D_pad = _round_up(D, 128)
    dk_pad = _round_up(d_k, 128)
    HDK = num_heads * dk_pad
    dff_pad = _round_up(d_ff, 128)

    if seq_tile is None:
        seq_tile = min(256, _round_up(S, 8))
    seq_tile = max(8, _round_up(seq_tile, 8))
    S_pad = _round_up(S, seq_tile)
    n_seq = S_pad // seq_tile

    if ff_chunk is None:
        ff_chunk = min(512, dff_pad)
    ff_chunk = min(_round_up(ff_chunk, 128), dff_pad)
    assert dff_pad % ff_chunk == 0

    # ---- zero-padded, head-grouped, bf16 weights -----------------------------
    scale = 1.0 / math.sqrt(d_k)

    def head_cols(w, scl=1.0):        # (D, D) -> (D_pad, HDK), per-head dk padded
        w = (w * scl).reshape(D, num_heads, d_k)
        w = jnp.pad(w, ((0, D_pad - D), (0, 0), (0, dk_pad - d_k)))
        return w.reshape(D_pad, HDK)

    def head_bias(b, scl=1.0):        # (1, D) -> (1, HDK)
        b = (b * scl).reshape(num_heads, d_k)
        b = jnp.pad(b, ((0, 0), (0, dk_pad - d_k)))
        return b.reshape(1, HDK)

    def pad2(a, r, c):
        return jnp.pad(a, ((0, r - a.shape[0]), (0, c - a.shape[1])))

    wqkv = jnp.concatenate([head_cols(params["wq"], scale),    # 1/sqrt(d_k) folded in
                            head_cols(params["wk"]),
                            head_cols(params["wv"])], axis=1).astype(bf16)
    bqkv = jnp.concatenate([head_bias(params["bq"], scale),
                            head_bias(params["bk"]),
                            head_bias(params["bv"])], axis=1).astype(f32)
    wo = params["wo"].reshape(num_heads, d_k, D)
    wo = jnp.pad(wo, ((0, 0), (0, dk_pad - d_k), (0, D_pad - D)))
    wo = wo.reshape(HDK, D_pad).astype(bf16)
    bo = pad2(params["bo"], 1, D_pad).astype(f32)
    w1 = pad2(params["w1"], D_pad, dff_pad).astype(bf16)
    b1 = pad2(params["b1"], 1, dff_pad).astype(f32)
    w2 = pad2(params["w2"], dff_pad, D_pad).astype(bf16)
    b2 = pad2(params["b2"], 1, D_pad).astype(f32)
    g1 = pad2(params["g1"], 1, D_pad).astype(f32)     # zero-padded (not ones):
    be1 = pad2(params["be1"], 1, D_pad).astype(f32)   # keeps padded cols == 0
    g2 = pad2(params["g2"], 1, D_pad).astype(f32)
    be2 = pad2(params["be2"], 1, D_pad).astype(f32)

    x_p = jnp.pad(x, ((0, 0), (0, S_pad - S), (0, D_pad - D))).astype(bf16)

    weight_args = (wo, bo, g1, be1, w1, b1, w2, b2, g2, be2)

    def nbytes(*arrs):
        return sum(a.size * a.dtype.itemsize for a in arrs)

    per_step_b = (2 * seq_tile * D_pad * 2                       # x + out tiles (bf16)
                  + 3 * num_heads * seq_tile * dk_pad * 2)       # q/k/v tiles (bf16)
    scratch_b = (num_heads * seq_tile * (dk_pad + 2 * 128) * 4   # acc + m + l (f32)
                 + seq_tile * HDK * 2)                           # ctx slab (bf16)
    est_b = 2 * per_step_b + 2 * nbytes(*weight_args) + scratch_b
    per_step_a = seq_tile * D_pad * 2 + 3 * num_heads * seq_tile * dk_pad * 2
    est_a = 2 * per_step_a + 2 * nbytes(wqkv, bqkv)
    vmem_limit = _pick_vmem_limit(max(est_a, est_b))

    # ---- Kernel A: fused QKV projection --------------------------------------
    cost_a = pl.CostEstimate(
        flops=int(2 * B * S_pad * D_pad * 3 * HDK),
        transcendentals=0,
        bytes_accessed=int(nbytes(x_p, wqkv, bqkv)
                           + 3 * B * num_heads * S_pad * dk_pad * 2))
    q, k, v = pl.pallas_call(
        functools.partial(qkv_projection_kernel,
                          num_heads=num_heads, dk_pad=dk_pad),
        out_shape=tuple(jax.ShapeDtypeStruct((B, num_heads, S_pad, dk_pad), bf16)
                        for _ in range(3)),
        grid=(B, n_seq),
        in_specs=[pl.BlockSpec((1, seq_tile, D_pad), lambda b, s: (b, s, 0)),
                  pl.BlockSpec((D_pad, 3 * HDK), lambda b, s: (0, 0)),
                  pl.BlockSpec((1, 3 * HDK), lambda b, s: (0, 0))],
        out_specs=tuple(pl.BlockSpec((1, num_heads, seq_tile, dk_pad),
                                     lambda b, s: (b, 0, s, 0))
                        for _ in range(3)),
        compiler_params=pltpu.CompilerParams(
            dimension_semantics=("parallel", "parallel"),
            vmem_limit_bytes=vmem_limit),
        cost_estimate=cost_a,
    )(x_p, wqkv, bqkv)

    # ---- Kernel B: flash attention + W_o + LN1 + FFN + LN2 -------------------
    kernel_b = functools.partial(
        attn_ffn_kernel,
        num_heads=num_heads, dk_pad=dk_pad, d_model=D, d_model_pad=D_pad,
        dff_pad=dff_pad, ff_chunk=ff_chunk, seq_len=S, key_tile=seq_tile,
        mask_keys=(S_pad != S))

    cost_b = pl.CostEstimate(
        flops=int(4 * B * num_heads * S_pad ** 2 * dk_pad
                  + 2 * B * S_pad * HDK * D_pad
                  + 4 * B * S_pad * D_pad * dff_pad),
        transcendentals=int(B * num_heads * S_pad ** 2 + B * S_pad * dff_pad),
        bytes_accessed=int(nbytes(x_p, *weight_args)
                           + 3 * B * num_heads * S_pad * dk_pad * 2 * n_seq
                           + B * S_pad * D_pad * 2))

    wspecs = [pl.BlockSpec(a.shape, lambda b, qi, ki: (0, 0)) for a in weight_args]
    out_p = pl.pallas_call(
        kernel_b,
        out_shape=jax.ShapeDtypeStruct((B, S_pad, D_pad), bf16),
        grid=(B, n_seq, n_seq),
        in_specs=[pl.BlockSpec((1, seq_tile, D_pad),
                               lambda b, qi, ki: (b, qi, 0)),
                  pl.BlockSpec((1, num_heads, seq_tile, dk_pad),
                               lambda b, qi, ki: (b, 0, qi, 0)),
                  pl.BlockSpec((1, num_heads, seq_tile, dk_pad),
                               lambda b, qi, ki: (b, 0, ki, 0)),
                  pl.BlockSpec((1, num_heads, seq_tile, dk_pad),
                               lambda b, qi, ki: (b, 0, ki, 0)),
                  *wspecs],
        out_specs=pl.BlockSpec((1, seq_tile, D_pad), lambda b, qi, ki: (b, qi, 0)),
        scratch_shapes=[pltpu.VMEM((num_heads, seq_tile, 1), f32),      # m
                        pltpu.VMEM((num_heads, seq_tile, 1), f32),      # l
                        pltpu.VMEM((num_heads, seq_tile, dk_pad), f32), # acc
                        pltpu.VMEM((seq_tile, HDK), bf16)],             # ctx slab
        compiler_params=pltpu.CompilerParams(
            dimension_semantics=("parallel", "parallel", "arbitrary"),
            vmem_limit_bytes=vmem_limit),
        cost_estimate=cost_b,
    )(x_p, q, k, v, *weight_args)

    return out_p[:, :S, :D].astype(x.dtype)


# --------------------------------------------------------------------------
# Params + pure-JAX reference
# --------------------------------------------------------------------------
def init_params(key, d_model, d_ff):
    ks = jax.random.split(key, 12)
    nrm = lambda k, shp: (0.02 * jax.random.normal(k, shp)).astype(jnp.float32)
    return {
        # linear weights stored already transposed: (in, out)
        "wq": nrm(ks[0], (d_model, d_model)), "bq": nrm(ks[1], (1, d_model)),
        "wk": nrm(ks[2], (d_model, d_model)), "bk": nrm(ks[3], (1, d_model)),
        "wv": nrm(ks[4], (d_model, d_model)), "bv": nrm(ks[5], (1, d_model)),
        "wo": nrm(ks[6], (d_model, d_model)), "bo": nrm(ks[7], (1, d_model)),
        "w1": nrm(ks[8], (d_model, d_ff)),    "b1": nrm(ks[9], (1, d_ff)),
        "w2": nrm(ks[10], (d_ff, d_model)),   "b2": nrm(ks[11], (1, d_model)),
        "g1": jnp.ones((1, d_model), jnp.float32),
        "be1": jnp.zeros((1, d_model), jnp.float32),
        "g2": jnp.ones((1, d_model), jnp.float32),
        "be2": jnp.zeros((1, d_model), jnp.float32),
    }


def reference_block(x, params, num_heads):
    """Pure-JAX fp32 reference (eval-mode dropout), for sanity checking."""
    B, S, D = x.shape
    d_k = D // num_heads
    lin = lambda a, w, b: a @ w + b
    q = lin(x, params["wq"], params["bq"]).reshape(B, S, num_heads, d_k).transpose(0, 2, 1, 3)
    k = lin(x, params["wk"], params["bk"]).reshape(B, S, num_heads, d_k).transpose(0, 2, 1, 3)
    v = lin(x, params["wv"], params["bv"]).reshape(B, S, num_heads, d_k).transpose(0, 2, 1, 3)
    scores = jnp.einsum("bhqd,bhkd->bhqk", q, k) / math.sqrt(d_k)
    attn = jax.nn.softmax(scores, axis=-1)
    ao = jnp.einsum("bhqk,bhkd->bhqd", attn, v).transpose(0, 2, 1, 3).reshape(B, S, D)
    ao = lin(ao, params["wo"], params["bo"])

    def ln(a, g, b, eps=1e-5):
        mu = a.mean(-1, keepdims=True)
        var = ((a - mu) ** 2).mean(-1, keepdims=True)
        return (a - mu) * jax.lax.rsqrt(var + eps) * g + b

    x1 = ln(x + ao, params["g1"], params["be1"])
    h = jax.nn.gelu(lin(x1, params["w1"], params["b1"]), approximate=False)
    ff = lin(h, params["w2"], params["b2"])
    return ln(x1 + ff, params["g2"], params["be2"])


if __name__ == "__main__":
    # Small shapes that still exercise: 2 query tiles x 2 key tiles (flash path),
    # sequence padding + key masking (S=12 -> S_pad=16), d_model / d_k / d_ff
    # lane-padding (32/8/192 -> 128/128/256) and 2 FFN chunks.
    B, S, D, H, DFF = 2, 12, 32, 4, 192

    key = jax.random.PRNGKey(0)
    kx, kp = jax.random.split(key)
    x = jax.random.normal(kx, (B, S, D), dtype=jnp.float32)
    params = init_params(kp, D, DFF)

    out = transformer_block(x, params, num_heads=H, seq_tile=8, ff_chunk=128)
    out = jax.block_until_ready(out)

    ref = reference_block(x, params, num_heads=H)
    assert out.shape == (B, S, D)
    max_err = float(jnp.max(jnp.abs(out - ref)))
    # bf16 weights / activations / IO vs. an fp32 reference -> loose tolerance.
    assert jnp.allclose(out, ref, atol=8e-2, rtol=8e-2), max_err

    print("KERNEL_OK")
</pallas_src>

<mosaic_0001>
module attributes {stable_mosaic.version = 11 : i64} {
  func.func @qkv_projection_kernel(%arg0: i32, %arg1: i32, %arg2: memref<1x8x128xbf16, #tpu.memory_space<vmem>>, %arg3: memref<128x1536xbf16, #tpu.memory_space<vmem>>, %arg4: memref<1x1536xf32, #tpu.memory_space<vmem>>, %arg5: memref<1x4x8x128xbf16, #tpu.memory_space<vmem>>, %arg6: memref<1x4x8x128xbf16, #tpu.memory_space<vmem>>, %arg7: memref<1x4x8x128xbf16, #tpu.memory_space<vmem>>) attributes {dimension_semantics = [#tpu.dimension_semantics<parallel>, #tpu.dimension_semantics<parallel>], iteration_bounds = array<i64: 2, 2>, scalar_prefetch = 0 : i64, scratch_operands = 0 : i64, tpu.core_type = #tpu.core_type<tc>, window_params = [{transform_indices = @transform_0, window_bounds = array<i64: 1, 8, 128>}, {pipeline_mode = #tpu.pipeline_mode<synchronous>, transform_indices = @transform_1, window_bounds = array<i64: 128, 1536>}, {pipeline_mode = #tpu.pipeline_mode<synchronous>, transform_indices = @transform_2, window_bounds = array<i64: 1, 1536>}, {transform_indices = @transform_3, window_bounds = array<i64: 1, 4, 8, 128>}, {transform_indices = @transform_4, window_bounds = array<i64: 1, 4, 8, 128>}, {transform_indices = @transform_5, window_bounds = array<i64: 1, 4, 8, 128>}]} {
    %c0 = arith.constant 0 : index
    %c0_0 = arith.constant 0 : index
    %c0_1 = arith.constant 0 : index
    %0 = vector.load %arg2[%c0, %c0_0, %c0_1] : memref<1x8x128xbf16, #tpu.memory_space<vmem>>, vector<1x8x128xbf16>
    %1 = vector.shape_cast %0 : vector<1x8x128xbf16> to vector<8x128xbf16>
    %c0_2 = arith.constant 0 : index
    %c0_3 = arith.constant 0 : index
    %2 = vector.load %arg3[%c0_2, %c0_3] : memref<128x1536xbf16, #tpu.memory_space<vmem>>, vector<128x1536xbf16>
    %cst = arith.constant dense<0.000000e+00> : vector<8x1536xf32>
    %3 = tpu.matmul %1, %2, %cst {dimension_numbers = #tpu.dot_dimension_numbers<[1], [0], [0], [1], [0, 0, 1, 1], [], []>} : vector<8x128xbf16>, vector<128x1536xbf16>, vector<8x1536xf32> -> vector<8x1536xf32>
    %c0_4 = arith.constant 0 : index
    %c0_5 = arith.constant 0 : index
    %4 = vector.load %arg4[%c0_4, %c0_5] : memref<1x1536xf32, #tpu.memory_space<vmem>>, vector<1x1536xf32>
    %5 = vector.broadcast %4 : vector<1x1536xf32> to vector<8x1536xf32>
    %6 = arith.addf %3, %5 : vector<8x1536xf32>
    %7 = arith.truncf %6 : vector<8x1536xf32> to vector<8x1536xbf16>
    %8 = vector.extract_strided_slice %7 {offsets = [0, 0], sizes = [8, 128], strides = [1, 1]} : vector<8x1536xbf16> to vector<8x128xbf16>
    %c0_6 = arith.constant 0 : index
    %c0_7 = arith.constant 0 : index
    %c0_8 = arith.constant 0 : index
    %c0_9 = arith.constant 0 : index
    %9 = vector.load %arg5[%c0_6, %c0_7, %c0_8, %c0_9] : memref<1x4x8x128xbf16, #tpu.memory_space<vmem>>, vector<1x1x8x128xbf16>
    %10 = vector.shape_cast %9 : vector<1x1x8x128xbf16> to vector<8x128xbf16>
    %11 = vector.shape_cast %8 : vector<8x128xbf16> to vector<1x1x8x128xbf16>
    tpu.vector_store %arg5[%c0_6, %c0_7, %c0_8, %c0_9], %11 {strides = array<i32>} : memref<1x4x8x128xbf16, #tpu.memory_space<vmem>>, vector<1x1x8x128xbf16>,
    %12 = vector.extract_strided_slice %7 {offsets = [0, 512], sizes = [8, 128], strides = [1, 1]} : vector<8x1536xbf16> to vector<8x128xbf16>
    %c0_10 = arith.constant 0 : index
    %c0_11 = arith.constant 0 : index
    %c0_12 = arith.constant 0 : index
    %c0_13 = arith.constant 0 : index
    %13 = vector.load %arg6[%c0_10, %c0_11, %c0_12, %c0_13] : memref<1x4x8x128xbf16, #tpu.memory_space<vmem>>, vector<1x1x8x128xbf16>
    %14 = vector.shape_cast %13 : vector<1x1x8x128xbf16> to vector<8x128xbf16>
    %15 = vector.shape_cast %12 : vector<8x128xbf16> to vector<1x1x8x128xbf16>
    tpu.vector_store %arg6[%c0_10, %c0_11, %c0_12, %c0_13], %15 {strides = array<i32>} : memref<1x4x8x128xbf16, #tpu.memory_space<vmem>>, vector<1x1x8x128xbf16>,
    %16 = vector.extract_strided_slice %7 {offsets = [0, 1024], sizes = [8, 128], strides = [1, 1]} : vector<8x1536xbf16> to vector<8x128xbf16>
    %c0_14 = arith.constant 0 : index
    %c0_15 = arith.constant 0 : index
    %c0_16 = arith.constant 0 : index
    %c0_17 = arith.constant 0 : index
    %17 = vector.load %arg7[%c0_14, %c0_15, %c0_16, %c0_17] : memref<1x4x8x128xbf16, #tpu.memory_space<vmem>>, vector<1x1x8x128xbf16>
    %18 = vector.shape_cast %17 : vector<1x1x8x128xbf16> to vector<8x128xbf16>
    %19 = vector.shape_cast %16 : vector<8x128xbf16> to vector<1x1x8x128xbf16>
    tpu.vector_store %arg7[%c0_14, %c0_15, %c0_16, %c0_17], %19 {strides = array<i32>} : memref<1x4x8x128xbf16, #tpu.memory_space<vmem>>, vector<1x1x8x128xbf16>,
    %20 = vector.extract_strided_slice %7 {offsets = [0, 128], sizes = [8, 128], strides = [1, 1]} : vector<8x1536xbf16> to vector<8x128xbf16>
    %c0_18 = arith.constant 0 : index
    %c1 = arith.constant 1 : index
    %c0_19 = arith.constant 0 : index
    %c0_20 = arith.constant 0 : index
    %21 = vector.load %arg5[%c0_18, %c1, %c0_19, %c0_20] : memref<1x4x8x128xbf16, #tpu.memory_space<vmem>>, vector<1x1x8x128xbf16>
    %22 = vector.shape_cast %21 : vector<1x1x8x128xbf16> to vector<8x128xbf16>
    %23 = vector.shape_cast %20 : vector<8x128xbf16> to vector<1x1x8x128xbf16>
    tpu.vector_store %arg5[%c0_18, %c1, %c0_19, %c0_20], %23 {strides = array<i32>} : memref<1x4x8x128xbf16, #tpu.memory_space<vmem>>, vector<1x1x8x128xbf16>,
    %24 = vector.extract_strided_slice %7 {offsets = [0, 640], sizes = [8, 128], strides = [1, 1]} : vector<8x1536xbf16> to vector<8x128xbf16>
    %c0_21 = arith.constant 0 : index
    %c1_22 = arith.constant 1 : index
    %c0_23 = arith.constant 0 : index
    %c0_24 = arith.constant 0 : index
    %25 = vector.load %arg6[%c0_21, %c1_22, %c0_23, %c0_24] : memref<1x4x8x128xbf16, #tpu.memory_space<vmem>>, vector<1x1x8x128xbf16>
    %26 = vector.shape_cast %25 : vector<1x1x8x128xbf16> to vector<8x128xbf16>
    %27 = vector.shape_cast %24 : vector<8x128xbf16> to vector<1x1x8x128xbf16>
    tpu.vector_store %arg6[%c0_21, %c1_22, %c0_23, %c0_24], %27 {strides = array<i32>} : memref<1x4x8x128xbf16, #tpu.memory_space<vmem>>, vector<1x1x8x128xbf16>,
    %28 = vector.extract_strided_slice %7 {offsets = [0, 1152], sizes = [8, 128], strides = [1, 1]} : vector<8x1536xbf16> to vector<8x128xbf16>
    %c0_25 = arith.constant 0 : index
    %c1_26 = arith.constant 1 : index
    %c0_27 = arith.constant 0 : index
    %c0_28 = arith.constant 0 : index
    %29 = vector.load %arg7[%c0_25, %c1_26, %c0_27, %c0_28] : memref<1x4x8x128xbf16, #tpu.memory_space<vmem>>, vector<1x1x8x128xbf16>
    %30 = vector.shape_cast %29 : vector<1x1x8x128xbf16> to vector<8x128xbf16>
    %31 = vector.shape_cast %28 : vector<8x128xbf16> to vector<1x1x8x128xbf16>
    tpu.vector_store %arg7[%c0_25, %c1_26, %c0_27, %c0_28], %31 {strides = array<i32>} : memref<1x4x8x128xbf16, #tpu.memory_space<vmem>>, vector<1x1x8x128xbf16>,
    %32 = vector.extract_strided_slice %7 {offsets = [0, 256], sizes = [8, 128], strides = [1, 1]} : vector<8x1536xbf16> to vector<8x128xbf16>
    %c0_29 = arith.constant 0 : index
    %c2 = arith.constant 2 : index
    %c0_30 = arith.constant 0 : index
    %c0_31 = arith.constant 0 : index
    %33 = vector.load %arg5[%c0_29, %c2, %c0_30, %c0_31] : memref<1x4x8x128xbf16, #tpu.memory_space<vmem>>, vector<1x1x8x128xbf16>
    %34 = vector.shape_cast %33 : vector<1x1x8x128xbf16> to vector<8x128xbf16>
    %35 = vector.shape_cast %32 : vector<8x128xbf16> to vector<1x1x8x128xbf16>
    tpu.vector_store %arg5[%c0_29, %c2, %c0_30, %c0_31], %35 {strides = array<i32>} : memref<1x4x8x128xbf16, #tpu.memory_space<vmem>>, vector<1x1x8x128xbf16>,
    %36 = vector.extract_strided_slice %7 {offsets = [0, 768], sizes = [8, 128], strides = [1, 1]} : vector<8x1536xbf16> to vector<8x128xbf16>
    %c0_32 = arith.constant 0 : index
    %c2_33 = arith.constant 2 : index
    %c0_34 = arith.constant 0 : index
    %c0_35 = arith.constant 0 : index
    %37 = vector.load %arg6[%c0_32, %c2_33, %c0_34, %c0_35] : memref<1x4x8x128xbf16, #tpu.memory_space<vmem>>, vector<1x1x8x128xbf16>
    %38 = vector.shape_cast %37 : vector<1x1x8x128xbf16> to vector<8x128xbf16>
    %39 = vector.shape_cast %36 : vector<8x128xbf16> to vector<1x1x8x128xbf16>
    tpu.vector_store %arg6[%c0_32, %c2_33, %c0_34, %c0_35], %39 {strides = array<i32>} : memref<1x4x8x128xbf16, #tpu.memory_space<vmem>>, vector<1x1x8x128xbf16>,
    %40 = vector.extract_strided_slice %7 {offsets = [0, 1280], sizes = [8, 128], strides = [1, 1]} : vector<8x1536xbf16> to vector<8x128xbf16>
    %c0_36 = arith.constant 0 : index
    %c2_37 = arith.constant 2 : index
    %c0_38 = arith.constant 0 : index
    %c0_39 = arith.constant 0 : index
    %41 = vector.load %arg7[%c0_36, %c2_37, %c0_38, %c0_39] : memref<1x4x8x128xbf16, #tpu.memory_space<vmem>>, vector<1x1x8x128xbf16>
    %42 = vector.shape_cast %41 : vector<1x1x8x128xbf16> to vector<8x128xbf16>
    %43 = vector.shape_cast %40 : vector<8x128xbf16> to vector<1x1x8x128xbf16>
    tpu.vector_store %arg7[%c0_36, %c2_37, %c0_38, %c0_39], %43 {strides = array<i32>} : memref<1x4x8x128xbf16, #tpu.memory_space<vmem>>, vector<1x1x8x128xbf16>,
    %44 = vector.extract_strided_slice %7 {offsets = [0, 384], sizes = [8, 128], strides = [1, 1]} : vector<8x1536xbf16> to vector<8x128xbf16>
    %c0_40 = arith.constant 0 : index
    %c3 = arith.constant 3 : index
    %c0_41 = arith.constant 0 : index
    %c0_42 = arith.constant 0 : index
    %45 = vector.load %arg5[%c0_40, %c3, %c0_41, %c0_42] : memref<1x4x8x128xbf16, #tpu.memory_space<vmem>>, vector<1x1x8x128xbf16>
    %46 = vector.shape_cast %45 : vector<1x1x8x128xbf16> to vector<8x128xbf16>
    %47 = vector.shape_cast %44 : vector<8x128xbf16> to vector<1x1x8x128xbf16>
    tpu.vector_store %arg5[%c0_40, %c3, %c0_41, %c0_42], %47 {strides = array<i32>} : memref<1x4x8x128xbf16, #tpu.memory_space<vmem>>, vector<1x1x8x128xbf16>,
    %48 = vector.extract_strided_slice %7 {offsets = [0, 896], sizes = [8, 128], strides = [1, 1]} : vector<8x1536xbf16> to vector<8x128xbf16>
    %c0_43 = arith.constant 0 : index
    %c3_44 = arith.constant 3 : index
    %c0_45 = arith.constant 0 : index
    %c0_46 = arith.constant 0 : index
    %49 = vector.load %arg6[%c0_43, %c3_44, %c0_45, %c0_46] : memref<1x4x8x128xbf16, #tpu.memory_space<vmem>>, vector<1x1x8x128xbf16>
    %50 = vector.shape_cast %49 : vector<1x1x8x128xbf16> to vector<8x128xbf16>
    %51 = vector.shape_cast %48 : vector<8x128xbf16> to vector<1x1x8x128xbf16>
    tpu.vector_store %arg6[%c0_43, %c3_44, %c0_45, %c0_46], %51 {strides = array<i32>} : memref<1x4x8x128xbf16, #tpu.memory_space<vmem>>, vector<1x1x8x128xbf16>,
    %52 = vector.extract_strided_slice %7 {offsets = [0, 1408], sizes = [8, 128], strides = [1, 1]} : vector<8x1536xbf16> to vector<8x128xbf16>
    %c0_47 = arith.constant 0 : index
    %c3_48 = arith.constant 3 : index
    %c0_49 = arith.constant 0 : index
    %c0_50 = arith.constant 0 : index
    %53 = vector.load %arg7[%c0_47, %c3_48, %c0_49, %c0_50] : memref<1x4x8x128xbf16, #tpu.memory_space<vmem>>, vector<1x1x8x128xbf16>
    %54 = vector.shape_cast %53 : vector<1x1x8x128xbf16> to vector<8x128xbf16>
    %55 = vector.shape_cast %52 : vector<8x128xbf16> to vector<1x1x8x128xbf16>
    tpu.vector_store %arg7[%c0_47, %c3_48, %c0_49, %c0_50], %55 {strides = array<i32>} : memref<1x4x8x128xbf16, #tpu.memory_space<vmem>>, vector<1x1x8x128xbf16>,
    return
  }
  func.func @transform_0(%arg0: i32, %arg1: i32) -> (i32, i32, i32) {
    %c0_i32 = arith.constant 0 : i32
    %c0_i32_0 = arith.constant 0 : i32
    return %arg0, %arg1, %c0_i32 : i32, i32, i32
  }
  func.func @transform_1(%arg0: i32, %arg1: i32) -> (i32, i32) {
    %c0_i32 = arith.constant 0 : i32
    %c0_i32_0 = arith.constant 0 : i32
    %c0_i32_1 = arith.constant 0 : i32
    return %c0_i32, %c0_i32_0 : i32, i32
  }
  func.func @transform_2(%arg0: i32, %arg1: i32) -> (i32, i32) {
    %c0_i32 = arith.constant 0 : i32
    %c0_i32_0 = arith.constant 0 : i32
    %c0_i32_1 = arith.constant 0 : i32
    return %c0_i32, %c0_i32_0 : i32, i32
  }
  func.func @transform_3(%arg0: i32, %arg1: i32) -> (i32, i32, i32, i32) {
    %c0_i32 = arith.constant 0 : i32
    %c0_i32_0 = arith.constant 0 : i32
    %c0_i32_1 = arith.constant 0 : i32
    return %arg0, %c0_i32, %arg1, %c0_i32_0 : i32, i32, i32, i32
  }
  func.func @transform_4(%arg0: i32, %arg1: i32) -> (i32, i32, i32, i32) {
    %c0_i32 = arith.constant 0 : i32
    %c0_i32_0 = arith.constant 0 : i32
    %c0_i32_1 = arith.constant 0 : i32
    return %arg0, %c0_i32, %arg1, %c0_i32_0 : i32, i32, i32, i32
  }
  func.func @transform_5(%arg0: i32, %arg1: i32) -> (i32, i32, i32, i32) {
    %c0_i32 = arith.constant 0 : i32
    %c0_i32_0 = arith.constant 0 : i32
    %c0_i32_1 = arith.constant 0 : i32
    return %arg0, %c0_i32, %arg1, %c0_i32_0 : i32, i32, i32, i32
  }
}

</mosaic_0001>

<llo_original>
// kernel: tpu_custom_call.1
$region0: #{tpu_custom_call.1}
  #allocation0 [shape = 'u32[]', space=smem, size = 0x4, offset = 0x4, fixed_abs, tag = 'smem constant byte address 0x4 - core index']
  #allocation1 [shape = 'u32[144,128]{1,0:T(1,128)}', space=vmem, size = 0x12000, scoped, tag = 'internal scratch']
  %s0 = inlined_call_operand.hbm [shape: bf16[2,16,128], index: 0, kind: input, shape index: {}]
  %s1 = inlined_call_operand.hbm [shape: bf16[128,1536], index: 1, kind: input, shape index: {}]
  %s2 = inlined_call_operand.hbm [shape: f32[1,1536], index: 2, kind: input, shape index: {}]
  %s3 = inlined_call_operand.hbm [shape: bf16[2,4,16,128], index: 3, kind: output, shape index: {0}]
  %s4 = inlined_call_operand.hbm [shape: bf16[2,4,16,128], index: 4, kind: output, shape index: {1}]
  %s5 = inlined_call_operand.hbm [shape: bf16[2,4,16,128], index: 5, kind: output, shape index: {2}]
  %6 = xla_tuple %s3, %s4, %s5
  %s7 = sld [smem:[#allocation0]]
  $region73: #{tpu_custom_call.1} parent=0
    _
  %s9 = ssub.s32 1, %s7
  %s10 = scalar_select 0, %s9, %s7
  $region1: #{tpu_custom_call.1} parent=0
    #allocation2 [shape = 'u8[4096]{0}', space=vmem, size = 0x1000, scoped, tag = 'input window, operand 0']
    #allocation3 [shape = 's32[2]{0}', space=sflag, size = 0x8, scoped, tag = 'scoped memory for tpu_custom_call.1']
    #allocation4 [shape = 's32[2]{0}', space=sflag, size = 0x8, scoped, tag = 'scoped memory for tpu_custom_call.1']
    #allocation5 [shape = 'u8[393216]{0}', space=vmem, size = 0x60000, scoped, tag = 'input window, operand 1, single buffered']
    #allocation6 [shape = 's32[1]{0}', space=sflag, size = 0x4, scoped, tag = 'scoped memory for tpu_custom_call.1']
    #allocation7 [shape = 'u8[6144]{0}', space=vmem, size = 0x1800, scoped, tag = 'input window, operand 2, single buffered']
    #allocation8 [shape = 'u8[16384]{0}', space=vmem, size = 0x4000, scoped, tag = 'output window, operand 0']
    #allocation9 [shape = 'u8[16384]{0}', space=vmem, size = 0x4000, scoped, tag = 'output window, operand 1']
    #allocation10 [shape = 's32[2]{0}', space=sflag, size = 0x8, scoped, tag = 'scoped memory for tpu_custom_call.1']
    #allocation11 [shape = 'u8[16384]{0}', space=vmem, size = 0x4000, scoped, tag = 'output window, operand 2']
    %11 = vsyncpa [#allocation3], 0
    %s12 = scalar_lea.sflag [#allocation3], 1
    %13 = vsyncpa %s12, 0
    %14 = vsyncpa [#allocation6], 0
    %15 = vsyncpa [#allocation4], 0
    %s16 = scalar_lea.sflag [#allocation4], 1
    %17 = vsyncpa %s16, 0
    %18 = vsyncpa [#allocation10], 0
    %s19 = scalar_lea.sflag [#allocation10], 1
    %20 = vsyncpa %s19, 0
    loop: start=0, step=1, limit=6
    $region2: #{tpu_custom_call.1} parent=1 // loop_pre_header
      _
    $region3: #{tpu_custom_call.1} parent=1 // loop_header
      %s22 = sphi 0, %s26
      %p23 = scmp.ge.s32.totalorder %s22, 6
      %s29 = sphi 0, %s41
      %s30 = sphi 0, %s37
      %s31 = sphi 0, %s29
      %s32 = sphi 0, %s30
      %s33 = sphi 0, %s31
      %s34 = sphi 0, %s32
      %s46 = sphi 0, %s48
      %s49 = sphi 0, %s46
      %s50 = sphi 0, %s49
      %s66 = sphi 0, %s50
      %s70 = sphi 0, %s70
      %s72 = sphi 0, %s70
      %s73 = sphi 0, %s72
      %s87 = sphi 0, %s73
      %s91 = sphi 0, %s91
      %s93 = sphi 0, %s91
      %s94 = sphi 0, %s93
      %s108 = sphi 0, %s94
      %s116 = sphi 0, %s118
      %s119 = sphi 0, %s116
      %s120 = sphi 0, %s119
      %s136 = sphi 0, %s120
      %s144 = sphi 0, %s146
      %s147 = sphi 0, %s144
      %s148 = sphi 0, %s147
      %s164 = sphi 0, %s148
      %s172 = sphi 0, %s174
      %s175 = sphi 0, %s172
      %s176 = sphi 0, %s175
      %s192 = sphi 0, %s176
    $region4: #{tpu_custom_call.1} parent=1 // loop_header_branch
      %25 = sbr.rel (%p23) target = $region8
    $region5: #{tpu_custom_call.1} parent=1 // loop_body
      %s27 = ssub.s32 %s22, 1
      %s28 = ssub.s32 %s22, 2
      %s35 = sadd.s32 1, %s30
      %p36 = scmp.ge.s32.totalorder %s35, 2
      %s37 = scalar_select %p36, 0, %s35
      %s38 = sadd.s32 1, %s29
      %s39 = scalar_select %p36, %s38, %s29
      %p40 = scmp.ge.s32.totalorder %s39, 2
      %s41 = scalar_select %p40, 0, %s39
      %s42 = ssub.s32 %s29, %s41
      %s43 = ssub.s32 %s30, %s37
      %s44 = sor.u32 %s42, %s43
      %p45 = scmp.eq.s32.totalorder %s44, 0
      %s47 = sadd.s32 %s46, 1
      %s48 = scalar_select %p45, %s46, %s47
      %p51 = pneg %p45
      %p52 = scmp.eq.s32.totalorder %s22, 3
      %p53 = por %p51, %p52
      %p54 = scmp.ne.s32.totalorder %s46, %s49
      %p55 = scmp.eq.s32.totalorder %s22, 0
      %p56 = por %p54, %p55
      %p57 = scmp.ne.s32.totalorder %s46, %s49
      %p58 = scmp.eq.s32.totalorder %s27, 3
      %p59 = por %p57, %p58
      %p60 = scmp.ne.s32.totalorder %s49, %s50
      %p61 = scmp.eq.s32.totalorder %s27, 0
      %p62 = por %p60, %p61
      %p63 = scmp.ne.s32.totalorder %s49, %s50
      %p64 = scmp.eq.s32.totalorder %s28, 3
      %p65 = por %p63, %p64
      %p67 = scmp.ne.s32.totalorder %s50, %s66
      %p68 = scmp.eq.s32.totalorder %s28, 0
      %p69 = por %p67, %p68
      %s71 = sadd.s32 %s70, 1
      %p74 = scmp.eq.s32.totalorder %s22, 3
      %p75 = scmp.ne.s32.totalorder %s70, %s72
      %p76 = scmp.eq.s32.totalorder %s22, 0
      %p77 = por %p75, %p76
      %p78 = scmp.ne.s32.totalorder %s70, %s72
      %p79 = scmp.eq.s32.totalorder %s27, 3
      %p80 = por %p78, %p79
      %p81 = scmp.ne.s32.totalorder %s72, %s73
      %p82 = scmp.eq.s32.totalorder %s27, 0
      %p83 = por %p81, %p82
      %p84 = scmp.ne.s32.totalorder %s72, %s73
      %p85 = scmp.eq.s32.totalorder %s28, 3
      %p86 = por %p84, %p85
      %p88 = scmp.ne.s32.totalorder %s73, %s87
      %p89 = scmp.eq.s32.totalorder %s28, 0
      %p90 = por %p88, %p89
      %s92 = sadd.s32 %s91, 1
      %p95 = scmp.eq.s32.totalorder %s22, 3
      %p96 = scmp.ne.s32.totalorder %s91, %s93
      %p97 = scmp.eq.s32.totalorder %s22, 0
      %p98 = por %p96, %p97
      %p99 = scmp.ne.s32.totalorder %s91, %s93
      %p100 = scmp.eq.s32.totalorder %s27, 3
      %p101 = por %p99, %p100
      %p102 = scmp.ne.s32.totalorder %s93, %s94
      %p103 = scmp.eq.s32.totalorder %s27, 0
      %p104 = por %p102, %p103
      %p105 = scmp.ne.s32.totalorder %s93, %s94
      %p106 = scmp.eq.s32.totalorder %s28, 3
      %p107 = por %p105, %p106
      %p109 = scmp.ne.s32.totalorder %s94, %s108
      %p110 = scmp.eq.s32.totalorder %s28, 0
      %p111 = por %p109, %p110
      %s112 = ssub.s32 %s29, %s41
      %s113 = ssub.s32 %s30, %s37
      %s114 = sor.u32 %s112, %s113
      %p115 = scmp.eq.s32.totalorder %s114, 0
      %s117 = sadd.s32 %s116, 1
      %s118 = scalar_select %p115, %s116, %s117
      %p121 = pneg %p115
      %p122 = scmp.eq.s32.totalorder %s22, 3
      %p123 = por %p121, %p122
      %p124 = scmp.ne.s32.totalorder %s116, %s119
      %p125 = scmp.eq.s32.totalorder %s22, 0
      %p126 = por %p124, %p125
      %p127 = scmp.ne.s32.totalorder %s116, %s119
      %p128 = scmp.eq.s32.totalorder %s27, 3
      %p129 = por %p127, %p128
      %p130 = scmp.ne.s32.totalorder %s119, %s120
      %p131 = scmp.eq.s32.totalorder %s27, 0
      %p132 = por %p130, %p131
      %p133 = scmp.ne.s32.totalorder %s119, %s120
      %p134 = scmp.eq.s32.totalorder %s28, 3
      %p135 = por %p133, %p134
      %p137 = scmp.ne.s32.totalorder %s120, %s136
      %p138 = scmp.eq.s32.totalorder %s28, 0
      %p139 = por %p137, %p138
      %s140 = ssub.s32 %s29, %s41
      %s141 = ssub.s32 %s30, %s37
      %s142 = sor.u32 %s140, %s141
      %p143 = scmp.eq.s32.totalorder %s142, 0
      %s145 = sadd.s32 %s144, 1
      %s146 = scalar_select %p143, %s144, %s145
      %p149 = pneg %p143
      %p150 = scmp.eq.s32.totalorder %s22, 3
      %p151 = por %p149, %p150
      %p152 = scmp.ne.s32.totalorder %s144, %s147
      %p153 = scmp.eq.s32.totalorder %s22, 0
      %p154 = por %p152, %p153
      %p155 = scmp.ne.s32.totalorder %s144, %s147
      %p156 = scmp.eq.s32.totalorder %s27, 3
      %p157 = por %p155, %p156
      %p158 = scmp.ne.s32.totalorder %s147, %s148
      %p159 = scmp.eq.s32.totalorder %s27, 0
      %p160 = por %p158, %p159
      %p161 = scmp.ne.s32.totalorder %s147, %s148
      %p162 = scmp.eq.s32.totalorder %s28, 3
      %p163 = por %p161, %p162
      %p165 = scmp.ne.s32.totalorder %s148, %s164
      %p166 = scmp.eq.s32.totalorder %s28, 0
      %p167 = por %p165, %p166
      %s168 = ssub.s32 %s29, %s41
      %s169 = ssub.s32 %s30, %s37
      %s170 = sor.u32 %s168, %s169
      %p171 = scmp.eq.s32.totalorder %s170, 0
      %s173 = sadd.s32 %s172, 1
      %s174 = scalar_select %p171, %s172, %s173
      %p177 = pneg %p171
      %p178 = scmp.eq.s32.totalorder %s22, 3
      %p179 = por %p177, %p178
      %p180 = scmp.ne.s32.totalorder %s172, %s175
      %p181 = scmp.eq.s32.totalorder %s22, 0
      %p182 = por %p180, %p181
      %p183 = scmp.ne.s32.totalorder %s172, %s175
      %p184 = scmp.eq.s32.totalorder %s27, 3
      %p185 = por %p183, %p184
      %p186 = scmp.ne.s32.totalorder %s175, %s176
      %p187 = scmp.eq.s32.totalorder %s27, 0
      %p188 = por %p186, %p187
      %p189 = scmp.ne.s32.totalorder %s175, %s176
      %p190 = scmp.eq.s32.totalorder %s28, 3
      %p191 = por %p189, %p190
      %p193 = scmp.ne.s32.totalorder %s176, %s192
      %p194 = scmp.eq.s32.totalorder %s28, 0
      %p195 = por %p193, %p194
      %p196 = scmp.le.s32.totalorder 1, %s22
      %p197 = scmp.lt.s32.totalorder %s22, 5
      %p198 = pnand %p196, %p197
      %p199 = pneg %p198
      // Predicated region
      $region9: #{tpu_custom_call.1} parent=5 // pred_check
        _
      $region10: #{tpu_custom_call.1} parent=5 // pred_check_branch
        %201 = sbr.rel (%p198) target = $region12
      $region11: #{tpu_custom_call.1} parent=5 // pred_region
        %s202 = ssub.s32 %s22, 1
        // Predicated region
        $region13: #{tpu_custom_call.1} parent=11 // pred_check
          %p203 = pneg %p83
        $region14: #{tpu_custom_call.1} parent=11 // pred_check_branch
          %205 = sbr.rel (%p203) target = $region16
        $region15: #{tpu_custom_call.1} parent=11 // pred_region
          %s207 = ssub.s32 12288, 12288
          %208 = vsyncadd [#allocation6], %s207
          %s209 = sshll.u32 [#allocation5], 4
          %s210 = int_to_ptr.vmem [resolvable:$true] %s209
          %215 = dma.hbm_to_vmem [thread:$0]  %s1, 12288, %s210, [#allocation6], 768, 768, 48
        $region16: #{tpu_custom_call.1} parent=11 // pred_fallthru
          _
        // Predicated region
        $region17: #{tpu_custom_call.1} parent=11 // pred_check
          %p216 = pneg %p104
        $region18: #{tpu_custom_call.1} parent=11 // pred_check_branch
          %218 = sbr.rel (%p216) target = $region20
        $region19: #{tpu_custom_call.1} parent=11 // pred_region
          %s220 = ssub.s32 192, 192
          %221 = vsyncadd [#allocation6], %s220
          %s223 = sshll.u32 [#allocation7], 4
          %s224 = int_to_ptr.vmem [resolvable:$true] %s223
          %226 = dma.hbm_to_vmem [thread:$0]  %s2, 192, %s224, [#allocation6]
        $region20: #{tpu_custom_call.1} parent=11 // pred_fallthru
          _
      $region12: #{tpu_custom_call.1} parent=5 // pred_fallthru
        _
      %p227 = scmp.lt.s32.totalorder %s22, 4
      // Predicated region
      $region21: #{tpu_custom_call.1} parent=5 // pred_check
        %p228 = pneg %p227
      $region22: #{tpu_custom_call.1} parent=5 // pred_check_branch
        %230 = sbr.rel (%p228) target = $region24
      $region23: #{tpu_custom_call.1} parent=5 // pred_region
        // Predicated region
        $region25: #{tpu_custom_call.1} parent=23 // pred_check
          %p231 = pneg %p56
        $region26: #{tpu_custom_call.1} parent=23 // pred_check_branch
          %233 = sbr.rel (%p231) target = $region28
        $region27: #{tpu_custom_call.1} parent=23 // pred_region
          %s234 = sand.u32 %s46, 1
          %s235 = scalar_lea.sflag [#allocation3], %s234
          %s236 = sand.u32 %s46, 1
          %s237 = smul.addr %s236, 4
          %s238 = scalar_lea.vmem [#allocation2], %s237
          %s240 = ssub.s32 64, 64
          %241 = vsyncadd %s235, %s240
          %s242 = smul.addr %s29, 2
          %s243 = sadd.s32 %s30, %s242
          %s244 = smul.addr %s243, 64
          %s245 = scalar_lea.hbm %s0, %s244
          %s247 = sshll.u32 %s238, 4
          %s248 = int_to_ptr.vmem [resolvable:$true] %s247
          %250 = dma.hbm_to_vmem [thread:$0]  %s245, 64, %s248, %s235
        $region28: #{tpu_custom_call.1} parent=23 // pred_fallthru
          _
      $region24: #{tpu_custom_call.1} parent=5 // pred_fallthru
        _
      %p251 = scmp.le.s32.totalorder 1, %s22
      %p252 = scmp.lt.s32.totalorder %s22, 5
      %p253 = pnand %p251, %p252
      %p254 = pneg %p253
      // Predicated region
      $region29: #{tpu_custom_call.1} parent=5 // pred_check
        _
      $region30: #{tpu_custom_call.1} parent=5 // pred_check_branch
        %256 = sbr.rel (%p253) target = $region32
      $region31: #{tpu_custom_call.1} parent=5 // pred_region
        %s257 = ssub.s32 %s22, 1
        %s258 = sand.u32 %s49, 1
        %s259 = scalar_lea.sflag [#allocation3], %s258
        %s260 = sand.u32 %s49, 1
        %s261 = smul.addr %s260, 4
        %s262 = scalar_lea.vmem [#allocation2], %s261
        // Predicated region
        $region33: #{tpu_custom_call.1} parent=31 // pred_check
          %p263 = pneg %p62
        $region34: #{tpu_custom_call.1} parent=31 // pred_check_branch
          %265 = sbr.rel (%p263) target = $region36
        $region35: #{tpu_custom_call.1} parent=31 // pred_region
          %266 = dma.done %s259, 64
        $region36: #{tpu_custom_call.1} parent=31 // pred_fallthru
          _
        // Predicated region
        $region37: #{tpu_custom_call.1} parent=31 // pred_check
          %p267 = pneg %p83
        $region38: #{tpu_custom_call.1} parent=31 // pred_check_branch
          %269 = sbr.rel (%p267) target = $region40
        $region39: #{tpu_custom_call.1} parent=31 // pred_region
          %270 = dma.done [#allocation6], 12288
        $region40: #{tpu_custom_call.1} parent=31 // pred_fallthru
          _
        // Predicated region
        $region41: #{tpu_custom_call.1} parent=31 // pred_check
          %p271 = pneg %p104
        $region42: #{tpu_custom_call.1} parent=31 // pred_check_branch
          %273 = sbr.rel (%p271) target = $region44
        $region43: #{tpu_custom_call.1} parent=31 // pred_region
          %274 = dma.done [#allocation6], 192
        $region44: #{tpu_custom_call.1} parent=31 // pred_fallthru
          _
        %s275 = sand.u32 %s49, 1
        %s276 = scalar_lea.sflag [#allocation3], %s275
        %s277 = sand.u32 %s49, 1
        %s278 = smul.addr %s277, 4
        %s279 = scalar_lea.vmem [#allocation2], %s278
        %p280 = pneg %p62
        %p281 = pneg %p59
        %p282 = pneg %p83
        %p283 = pneg %p80
        %p284 = pneg %p104
        %p285 = pneg %p101
        %p286 = pneg %p132
        %p287 = pneg %p129
        %s288 = sand.u32 %s119, 1
        %s289 = scalar_lea.sflag [#allocation4], %s288
        %s290 = sand.u32 %s119, 1
        %s291 = smul.addr %s290, 16
        %s292 = scalar_lea.vmem [#allocation8], %s291
        %p293 = pneg %p160
        %p294 = pneg %p157
        %s295 = sand.u32 %s27, 1
        %s296 = scalar_lea.sflag [#allocation10], %s295
        %s297 = sand.u32 %s147, 1
        %s298 = smul.addr %s297, 16
        %s299 = scalar_lea.vmem [#allocation9], %s298
        %p300 = pneg %p188
        %p301 = pneg %p185
        %s302 = sand.u32 %s27, 1
        %s303 = scalar_lea.sflag [#allocation10], %s302
        %s304 = sand.u32 %s175, 1
        %s305 = smul.addr %s304, 16
        %s306 = scalar_lea.vmem [#allocation11], %s305
        %v308 = vld [vmem:[%s262] sm:$0xf]
        %v309 = vld [vmem:[#allocation5] sm:$0xff]
        %v310 = vld [vmem:[#allocation5 + $0x8] sm:$0xff]
        %v311 = vld [vmem:[#allocation5 + $0x10] sm:$0xff]
        %v312 = vld [vmem:[#allocation5 + $0x18] sm:$0xff]
        %v313 = vld [vmem:[#allocation5 + $0x20] sm:$0xff]
        %v314 = vld [vmem:[#allocation5 + $0x28] sm:$0xff]
        %v315 = vld [vmem:[#allocation5 + $0x30] sm:$0xff]
        %v316 = vld [vmem:[#allocation5 + $0x38] sm:$0xff]
        %v317 = vld [vmem:[#allocation5 + $0x40] sm:$0xff]
        %v318 = vld [vmem:[#allocation5 + $0x48] sm:$0xff]
        %v319 = vld [vmem:[#allocation5 + $0x50] sm:$0xff]
        %v320 = vld [vmem:[#allocation5 + $0x58] sm:$0xff]
        %v321 = vld [vmem:[#allocation5 + $0x60] sm:$0xff]
        %v322 = vld [vmem:[#allocation5 + $0x68] sm:$0xff]
        %v323 = vld [vmem:[#allocation5 + $0x70] sm:$0xff]
        %v324 = vld [vmem:[#allocation5 + $0x78] sm:$0xff]
        %v325 = vld [vmem:[#allocation5 + $0x80] sm:$0xff]
        %v326 = vld [vmem:[#allocation5 + $0x88] sm:$0xff]
        %v327 = vld [vmem:[#allocation5 + $0x90] sm:$0xff]
        %v328 = vld [vmem:[#allocation5 + $0x98] sm:$0xff]
        %v329 = vld [vmem:[#allocation5 + $0xa0] sm:$0xff]
        %v330 = vld [vmem:[#allocation5 + $0xa8] sm:$0xff]
        %v331 = vld [vmem:[#allocation5 + $0xb0] sm:$0xff]
        %v332 = vld [vmem:[#allocation5 + $0xb8] sm:$0xff]
        %v333 = vld [vmem:[#allocation5 + $0xc0] sm:$0xff]
        %v334 = vld [vmem:[#allocation5 + $0xc8] sm:$0xff]
        %v335 = vld [vmem:[#allocation5 + $0xd0] sm:$0xff]
        %v336 = vld [vmem:[#allocation5 + $0xd8] sm:$0xff]
        %v337 = vld [vmem:[#allocation5 + $0xe0] sm:$0xff]
        %v338 = vld [vmem:[#allocation5 + $0xe8] sm:$0xff]
        %v339 = vld [vmem:[#allocation5 + $0xf0] sm:$0xff]
        %v340 = vld [vmem:[#allocation5 + $0xf8] sm:$0xff]
        %v341 = vld [vmem:[#allocation5 + $0x100] sm:$0xff]
        %v342 = vld [vmem:[#allocation5 + $0x108] sm:$0xff]
        %v343 = vld [vmem:[#allocation5 + $0x110] sm:$0xff]
        %v344 = vld [vmem:[#allocation5 + $0x118] sm:$0xff]
        %v345 = vld [vmem:[#allocation5 + $0x120] sm:$0xff]
        %v346 = vld [vmem:[#allocation5 + $0x128] sm:$0xff]
        %v347 = vld [vmem:[#allocation5 + $0x130] sm:$0xff]
        %v348 = vld [vmem:[#allocation5 + $0x138] sm:$0xff]
        %v349 = vld [vmem:[#allocation5 + $0x140] sm:$0xff]
        %v350 = vld [vmem:[#allocation5 + $0x148] sm:$0xff]
        %v351 = vld [vmem:[#allocation5 + $0x150] sm:$0xff]
        %v352 = vld [vmem:[#allocation5 + $0x158] sm:$0xff]
        %v353 = vld [vmem:[#allocation5 + $0x160] sm:$0xff]
        %v354 = vld [vmem:[#allocation5 + $0x168] sm:$0xff]
        %v355 = vld [vmem:[#allocation5 + $0x170] sm:$0xff]
        %v356 = vld [vmem:[#allocation5 + $0x178] sm:$0xff]
        %v357 = vld [vmem:[#allocation5 + $0x180] sm:$0xff]
        %v358 = vld [vmem:[#allocation5 + $0x188] sm:$0xff]
        %v359 = vld [vmem:[#allocation5 + $0x190] sm:$0xff]
        %v360 = vld [vmem:[#allocation5 + $0x198] sm:$0xff]
        %v361 = vld [vmem:[#allocation5 + $0x1a0] sm:$0xff]
        %v362 = vld [vmem:[#allocation5 + $0x1a8] sm:$0xff]
        %v363 = vld [vmem:[#allocation5 + $0x1b0] sm:$0xff]
        %v364 = vld [vmem:[#allocation5 + $0x1b8] sm:$0xff]
        %v365 = vld [vmem:[#allocation5 + $0x1c0] sm:$0xff]
        %v366 = vld [vmem:[#allocation5 + $0x1c8] sm:$0xff]
        %v367 = vld [vmem:[#allocation5 + $0x1d0] sm:$0xff]
        %v368 = vld [vmem:[#allocation5 + $0x1d8] sm:$0xff]
        %v369 = vld [vmem:[#allocation5 + $0x1e0] sm:$0xff]
        %v370 = vld [vmem:[#allocation5 + $0x1e8] sm:$0xff]
        %v371 = vld [vmem:[#allocation5 + $0x1f0] sm:$0xff]
        %v372 = vld [vmem:[#allocation5 + $0x1f8] sm:$0xff]
        %v373 = vld [vmem:[#allocation5 + $0x200] sm:$0xff]
        %v374 = vld [vmem:[#allocation5 + $0x208] sm:$0xff]
        %v375 = vld [vmem:[#allocation5 + $0x210] sm:$0xff]
        %v376 = vld [vmem:[#allocation5 + $0x218] sm:$0xff]
        %v377 = vld [vmem:[#allocation5 + $0x220] sm:$0xff]
        %v378 = vld [vmem:[#allocation5 + $0x228] sm:$0xff]
        %v379 = vld [vmem:[#allocation5 + $0x230] sm:$0xff]
        %v380 = vld [vmem:[#allocation5 + $0x238] sm:$0xff]
        %v381 = vld [vmem:[#allocation5 + $0x240] sm:$0xff]
        %v382 = vld [vmem:[#allocation5 + $0x248] sm:$0xff]
        %v383 = vld [vmem:[#allocation5 + $0x250] sm:$0xff]
        %v384 = vld [vmem:[#allocation5 + $0x258] sm:$0xff]
        %v385 = vld [vmem:[#allocation5 + $0x260] sm:$0xff]
        %v386 = vld [vmem:[#allocation5 + $0x268] sm:$0xff]
        %v387 = vld [vmem:[#allocation5 + $0x270] sm:$0xff]
        %v388 = vld [vmem:[#allocation5 + $0x278] sm:$0xff]
        %v389 = vld [vmem:[#allocation5 + $0x280] sm:$0xff]
        %v390 = vld [vmem:[#allocation5 + $0x288] sm:$0xff]
        %v391 = vld [vmem:[#allocation5 + $0x290] sm:$0xff]
        %v392 = vld [vmem:[#allocation5 + $0x298] sm:$0xff]
        %v393 = vld [vmem:[#allocation5 + $0x2a0] sm:$0xff]
        %v394 = vld [vmem:[#allocation5 + $0x2a8] sm:$0xff]
        %v395 = vld [vmem:[#allocation5 + $0x2b0] sm:$0xff]
        %v396 = vld [vmem:[#allocation5 + $0x2b8] sm:$0xff]
        %v397 = vld [vmem:[#allocation5 + $0x2c0] sm:$0xff]
        %v398 = vld [vmem:[#allocation5 + $0x2c8] sm:$0xff]
        %v399 = vld [vmem:[#allocation5 + $0x2d0] sm:$0xff]
        %v400 = vld [vmem:[#allocation5 + $0x2d8] sm:$0xff]
        %v401 = vld [vmem:[#allocation5 + $0x2e0] sm:$0xff]
        %v402 = vld [vmem:[#allocation5 + $0x2e8] sm:$0xff]
        %v403 = vld [vmem:[#allocation5 + $0x2f0] sm:$0xff]
        %v404 = vld [vmem:[#allocation5 + $0x2f8] sm:$0xff]
        %v405 = vld [vmem:[#allocation7] sm:$0xff]
        %v406 = vld [vmem:[#allocation7 + $0x8] sm:$0xf]
        %v409 = vlaneseq
        %v410 = vshrl.u32 %v409, 7
        %v411 = vsub.s32 0, %v410
        %v412 = vrot.slane %v405, %v411
        %v413 = vlaneseq
        %v414 = vshrl.u32 %v413, 7
        %v415 = vsub.s32 1, %v414
        %v416 = vrot.slane %v405, %v415
        %v417 = vlaneseq
        %v418 = vshrl.u32 %v417, 7
        %v419 = vsub.s32 2, %v418
        %v420 = vrot.slane %v405, %v419
        %v421 = vlaneseq
        %v422 = vshrl.u32 %v421, 7
        %v423 = vsub.s32 3, %v422
        %v424 = vrot.slane %v405, %v423
        %v425 = vlaneseq
        %v426 = vshrl.u32 %v425, 7
        %v427 = vsub.s32 4, %v426
        %v428 = vrot.slane %v405, %v427
        %v429 = vlaneseq
        %v430 = vshrl.u32 %v429, 7
        %v431 = vsub.s32 5, %v430
        %v432 = vrot.slane %v405, %v431
        %v433 = vlaneseq
        %v434 = vshrl.u32 %v433, 7
        %v435 = vsub.s32 6, %v434
        %v436 = vrot.slane %v405, %v435
        %v437 = vlaneseq
        %v438 = vshrl.u32 %v437, 7
        %v439 = vsub.s32 7, %v438
        %v440 = vrot.slane %v405, %v439
        %v441 = vlaneseq
        %v442 = vshrl.u32 %v441, 7
        %v443 = vsub.s32 0, %v442
        %v444 = vrot.slane %v406, %v443
        %v445 = vlaneseq
        %v446 = vshrl.u32 %v445, 7
        %v447 = vsub.s32 1, %v446
        %v448 = vrot.slane %v406, %v447
        %v449 = vlaneseq
        %v450 = vshrl.u32 %v449, 7
        %v451 = vsub.s32 2, %v450
        %v452 = vrot.slane %v406, %v451
        %v453 = vlaneseq
        %v454 = vshrl.u32 %v453, 7
        %v455 = vsub.s32 3, %v454
        %v456 = vrot.slane %v406, %v455
        %v565 = vunpack.c.l.b16 %v309
        %v566 = vunpack.c.h.b16 %v309
        %v567 = vunpack.c.l.b16 %v310
        %v568 = vunpack.c.h.b16 %v310
        %v569 = vunpack.c.l.b16 %v311
        %v570 = vunpack.c.h.b16 %v311
        %v571 = vunpack.c.l.b16 %v312
        %v572 = vunpack.c.h.b16 %v312
        %v573 = vunpack.c.l.b16 %v313
        %v574 = vunpack.c.h.b16 %v313
        %v575 = vunpack.c.l.b16 %v314
        %v576 = vunpack.c.h.b16 %v314
        %v577 = vunpack.c.l.b16 %v315
        %v578 = vunpack.c.h.b16 %v315
        %v579 = vunpack.c.l.b16 %v316
        %v580 = vunpack.c.h.b16 %v316
        %v581 = vunpack.c.l.b16 %v317
        %v582 = vunpack.c.h.b16 %v317
        %v583 = vunpack.c.l.b16 %v318
        %v584 = vunpack.c.h.b16 %v318
        %v585 = vunpack.c.l.b16 %v319
        %v586 = vunpack.c.h.b16 %v319
        %v587 = vunpack.c.l.b16 %v320
        %v588 = vunpack.c.h.b16 %v320
        %v589 = vunpack.c.l.b16 %v321
        %v590 = vunpack.c.h.b16 %v321
        %v591 = vunpack.c.l.b16 %v322
        %v592 = vunpack.c.h.b16 %v322
        %v593 = vunpack.c.l.b16 %v323
        %v594 = vunpack.c.h.b16 %v323
        %v595 = vunpack.c.l.b16 %v324
        %v596 = vunpack.c.h.b16 %v324
        %v597 = vunpack.c.l.b16 %v325
        %v598 = vunpack.c.h.b16 %v325
        %v599 = vunpack.c.l.b16 %v326
        %v600 = vunpack.c.h.b16 %v326
        %v601 = vunpack.c.l.b16 %v327
        %v602 = vunpack.c.h.b16 %v327
        %v603 = vunpack.c.l.b16 %v328
        %v604 = vunpack.c.h.b16 %v328
        %v605 = vunpack.c.l.b16 %v329
        %v606 = vunpack.c.h.b16 %v329
        %v607 = vunpack.c.l.b16 %v330
        %v608 = vunpack.c.h.b16 %v330
        %v609 = vunpack.c.l.b16 %v331
        %v610 = vunpack.c.h.b16 %v331
        %v611 = vunpack.c.l.b16 %v332
        %v612 = vunpack.c.h.b16 %v332
        %v613 = vunpack.c.l.b16 %v333
        %v614 = vunpack.c.h.b16 %v333
        %v615 = vunpack.c.l.b16 %v334
        %v616 = vunpack.c.h.b16 %v334
        %v617 = vunpack.c.l.b16 %v335
        %v618 = vunpack.c.h.b16 %v335
        %v619 = vunpack.c.l.b16 %v336
        %v620 = vunpack.c.h.b16 %v336
        %v621 = vunpack.c.l.b16 %v337
        %v622 = vunpack.c.h.b16 %v337
        %v623 = vunpack.c.l.b16 %v338
        %v624 = vunpack.c.h.b16 %v338
        %v625 = vunpack.c.l.b16 %v339
        %v626 = vunpack.c.h.b16 %v339
        %v627 = vunpack.c.l.b16 %v340
        %v628 = vunpack.c.h.b16 %v340
        %v629 = vunpack.c.l.b16 %v341
        %v630 = vunpack.c.h.b16 %v341
        %v631 = vunpack.c.l.b16 %v342
        %v632 = vunpack.c.h.b16 %v342
        %v633 = vunpack.c.l.b16 %v343
        %v634 = vunpack.c.h.b16 %v343
        %v635 = vunpack.c.l.b16 %v344
        %v636 = vunpack.c.h.b16 %v344
        %v637 = vunpack.c.l.b16 %v345
        %v638 = vunpack.c.h.b16 %v345
        %v639 = vunpack.c.l.b16 %v346
        %v640 = vunpack.c.h.b16 %v346
        %v641 = vunpack.c.l.b16 %v347
        %v642 = vunpack.c.h.b16 %v347
        %v643 = vunpack.c.l.b16 %v348
        %v644 = vunpack.c.h.b16 %v348
        %v645 = vunpack.c.l.b16 %v349
        %v646 = vunpack.c.h.b16 %v349
        %v647 = vunpack.c.l.b16 %v350
        %v648 = vunpack.c.h.b16 %v350
        %v649 = vunpack.c.l.b16 %v351
        %v650 = vunpack.c.h.b16 %v351
        %v651 = vunpack.c.l.b16 %v352
        %v652 = vunpack.c.h.b16 %v352
        %v653 = vunpack.c.l.b16 %v353
        %v654 = vunpack.c.h.b16 %v353
        %v655 = vunpack.c.l.b16 %v354
        %v656 = vunpack.c.h.b16 %v354
        %v657 = vunpack.c.l.b16 %v355
        %v658 = vunpack.c.h.b16 %v355
        %v659 = vunpack.c.l.b16 %v356
        %v660 = vunpack.c.h.b16 %v356
        %v661 = vunpack.c.l.b16 %v357
        %v662 = vunpack.c.h.b16 %v357
        %v663 = vunpack.c.l.b16 %v358
        %v664 = vunpack.c.h.b16 %v358
        %v665 = vunpack.c.l.b16 %v359
        %v666 = vunpack.c.h.b16 %v359
        %v667 = vunpack.c.l.b16 %v360
        %v668 = vunpack.c.h.b16 %v360
        %v669 = vunpack.c.l.b16 %v361
        %v670 = vunpack.c.h.b16 %v361
        %v671 = vunpack.c.l.b16 %v362
        %v672 = vunpack.c.h.b16 %v362
        %v673 = vunpack.c.l.b16 %v363
        %v674 = vunpack.c.h.b16 %v363
        %v675 = vunpack.c.l.b16 %v364
        %v676 = vunpack.c.h.b16 %v364
        %v677 = vunpack.c.l.b16 %v365
        %v678 = vunpack.c.h.b16 %v365
        %v679 = vunpack.c.l.b16 %v366
        %v680 = vunpack.c.h.b16 %v366
        %v681 = vunpack.c.l.b16 %v367
        %v682 = vunpack.c.h.b16 %v367
        %v683 = vunpack.c.l.b16 %v368
        %v684 = vunpack.c.h.b16 %v368
        %v685 = vunpack.c.l.b16 %v369
        %v686 = vunpack.c.h.b16 %v369
        %v687 = vunpack.c.l.b16 %v370
        %v688 = vunpack.c.h.b16 %v370
        %v689 = vunpack.c.l.b16 %v371
        %v690 = vunpack.c.h.b16 %v371
        %v691 = vunpack.c.l.b16 %v372
        %v692 = vunpack.c.h.b16 %v372
        %v693 = vunpack.c.l.b16 %v373
        %v694 = vunpack.c.h.b16 %v373
        %v695 = vunpack.c.l.b16 %v374
        %v696 = vunpack.c.h.b16 %v374
        %v697 = vunpack.c.l.b16 %v375
        %v698 = vunpack.c.h.b16 %v375
        %v699 = vunpack.c.l.b16 %v376
        %v700 = vunpack.c.h.b16 %v376
        %v701 = vunpack.c.l.b16 %v377
        %v702 = vunpack.c.h.b16 %v377
        %v703 = vunpack.c.l.b16 %v378
        %v704 = vunpack.c.h.b16 %v378
        %v705 = vunpack.c.l.b16 %v379
        %v706 = vunpack.c.h.b16 %v379
        %v707 = vunpack.c.l.b16 %v380
        %v708 = vunpack.c.h.b16 %v380
        %v709 = vunpack.c.l.b16 %v381
        %v710 = vunpack.c.h.b16 %v381
        %v711 = vunpack.c.l.b16 %v382
        %v712 = vunpack.c.h.b16 %v382
        %v713 = vunpack.c.l.b16 %v383
        %v714 = vunpack.c.h.b16 %v383
        %v715 = vunpack.c.l.b16 %v384
        %v716 = vunpack.c.h.b16 %v384
        %v717 = vunpack.c.l.b16 %v385
        %v718 = vunpack.c.h.b16 %v385
        %v719 = vunpack.c.l.b16 %v386
        %v720 = vunpack.c.h.b16 %v386
        %v721 = vunpack.c.l.b16 %v387
        %v722 = vunpack.c.h.b16 %v387
        %v723 = vunpack.c.l.b16 %v388
        %v724 = vunpack.c.h.b16 %v388
        %v725 = vunpack.c.l.b16 %v389
        %v726 = vunpack.c.h.b16 %v389
        %v727 = vunpack.c.l.b16 %v390
        %v728 = vunpack.c.h.b16 %v390
        %v729 = vunpack.c.l.b16 %v391
        %v730 = vunpack.c.h.b16 %v391
        %v731 = vunpack.c.l.b16 %v392
        %v732 = vunpack.c.h.b16 %v392
        %v733 = vunpack.c.l.b16 %v393
        %v734 = vunpack.c.h.b16 %v393
        %v735 = vunpack.c.l.b16 %v394
        %v736 = vunpack.c.h.b16 %v394
        %v737 = vunpack.c.l.b16 %v395
        %v738 = vunpack.c.h.b16 %v395
        %v739 = vunpack.c.l.b16 %v396
        %v740 = vunpack.c.h.b16 %v396
        %v741 = vunpack.c.l.b16 %v397
        %v742 = vunpack.c.h.b16 %v397
        %v743 = vunpack.c.l.b16 %v398
        %v744 = vunpack.c.h.b16 %v398
        %v745 = vunpack.c.l.b16 %v399
        %v746 = vunpack.c.h.b16 %v399
        %v747 = vunpack.c.l.b16 %v400
        %v748 = vunpack.c.h.b16 %v400
        %v749 = vunpack.c.l.b16 %v401
        %v750 = vunpack.c.h.b16 %v401
        %v751 = vunpack.c.l.b16 %v402
        %v752 = vunpack.c.h.b16 %v402
        %v753 = vunpack.c.l.b16 %v403
        %v754 = vunpack.c.h.b16 %v403
        %v755 = vunpack.c.l.b16 %v404
        %v756 = vunpack.c.h.b16 %v404
        %v757 = vpack.c.b16 %v577, %v565
        %v758 = vpack.c.b16 %v578, %v566
        %v759 = vpack.c.b16 %v579, %v567
        %v760 = vpack.c.b16 %v580, %v568
        %v761 = vpack.c.b16 %v581, %v569
        %v762 = vpack.c.b16 %v582, %v570
        %v763 = vpack.c.b16 %v583, %v571
        %v764 = vpack.c.b16 %v584, %v572
        %v765 = vpack.c.b16 %v585, %v573
        %v766 = vpack.c.b16 %v586, %v574
        %v767 = vpack.c.b16 %v587, %v575
        %v768 = vpack.c.b16 %v588, %v576
        %v769 = vpack.c.b16 %v601, %v589
        %v770 = vpack.c.b16 %v602, %v590
        %v771 = vpack.c.b16 %v603, %v591
        %v772 = vpack.c.b16 %v604, %v592
        %v773 = vpack.c.b16 %v605, %v593
        %v774 = vpack.c.b16 %v606, %v594
        %v775 = vpack.c.b16 %v607, %v595
        %v776 = vpack.c.b16 %v608, %v596
        %v777 = vpack.c.b16 %v609, %v597
        %v778 = vpack.c.b16 %v610, %v598
        %v779 = vpack.c.b16 %v611, %v599
        %v780 = vpack.c.b16 %v612, %v600
        %v781 = vpack.c.b16 %v625, %v613
        %v782 = vpack.c.b16 %v626, %v614
        %v783 = vpack.c.b16 %v627, %v615
        %v784 = vpack.c.b16 %v628, %v616
        %v785 = vpack.c.b16 %v629, %v617
        %v786 = vpack.c.b16 %v630, %v618
        %v787 = vpack.c.b16 %v631, %v619
        %v788 = vpack.c.b16 %v632, %v620
        %v789 = vpack.c.b16 %v633, %v621
        %v790 = vpack.c.b16 %v634, %v622
        %v791 = vpack.c.b16 %v635, %v623
        %v792 = vpack.c.b16 %v636, %v624
        %v793 = vpack.c.b16 %v649, %v637
        %v794 = vpack.c.b16 %v650, %v638
        %v795 = vpack.c.b16 %v651, %v639
        %v796 = vpack.c.b16 %v652, %v640
        %v797 = vpack.c.b16 %v653, %v641
        %v798 = vpack.c.b16 %v654, %v642
        %v799 = vpack.c.b16 %v655, %v643
        %v800 = vpack.c.b16 %v656, %v644
        %v801 = vpack.c.b16 %v657, %v645
        %v802 = vpack.c.b16 %v658, %v646
        %v803 = vpack.c.b16 %v659, %v647
        %v804 = vpack.c.b16 %v660, %v648
        %v805 = vpack.c.b16 %v673, %v661
        %v806 = vpack.c.b16 %v674, %v662
        %v807 = vpack.c.b16 %v675, %v663
        %v808 = vpack.c.b16 %v676, %v664
        %v809 = vpack.c.b16 %v677, %v665
        %v810 = vpack.c.b16 %v678, %v666
        %v811 = vpack.c.b16 %v679, %v667
        %v812 = vpack.c.b16 %v680, %v668
        %v813 = vpack.c.b16 %v681, %v669
        %v814 = vpack.c.b16 %v682, %v670
        %v815 = vpack.c.b16 %v683, %v671
        %v816 = vpack.c.b16 %v684, %v672
        %v817 = vpack.c.b16 %v697, %v685
        %v818 = vpack.c.b16 %v698, %v686
        %v819 = vpack.c.b16 %v699, %v687
        %v820 = vpack.c.b16 %v700, %v688
        %v821 = vpack.c.b16 %v701, %v689
        %v822 = vpack.c.b16 %v702, %v690
        %v823 = vpack.c.b16 %v703, %v691
        %v824 = vpack.c.b16 %v704, %v692
        %v825 = vpack.c.b16 %v705, %v693
        %v826 = vpack.c.b16 %v706, %v694
        %v827 = vpack.c.b16 %v707, %v695
        %v828 = vpack.c.b16 %v708, %v696
        %v829 = vpack.c.b16 %v721, %v709
        %v830 = vpack.c.b16 %v722, %v710
        %v831 = vpack.c.b16 %v723, %v711
        %v832 = vpack.c.b16 %v724, %v712
        %v833 = vpack.c.b16 %v725, %v713
        %v834 = vpack.c.b16 %v726, %v714
        %v835 = vpack.c.b16 %v727, %v715
        %v836 = vpack.c.b16 %v728, %v716
        %v837 = vpack.c.b16 %v729, %v717
        %v838 = vpack.c.b16 %v730, %v718
        %v839 = vpack.c.b16 %v731, %v719
        %v840 = vpack.c.b16 %v732, %v720
        %v841 = vpack.c.b16 %v745, %v733
        %v842 = vpack.c.b16 %v746, %v734
        %v843 = vpack.c.b16 %v747, %v735
        %v844 = vpack.c.b16 %v748, %v736
        %v845 = vpack.c.b16 %v749, %v737
        %v846 = vpack.c.b16 %v750, %v738
        %v847 = vpack.c.b16 %v751, %v739
        %v848 = vpack.c.b16 %v752, %v740
        %v849 = vpack.c.b16 %v753, %v741
        %v850 = vpack.c.b16 %v754, %v742
        %v851 = vpack.c.b16 %v755, %v743
        %v852 = vpack.c.b16 %v756, %v744
        %949 = vmatprep.subr.bf16.mxu0 %v758
        %950 = vmatpush1.bf16.msra.mxu0 %v757
        %951 = vmatprep.subr.bf16.mxu0 %v770
        %952 = vmatpush1.bf16.msra.mxu0 %v769
        %953 = vmatprep.subr.bf16.mxu0 %v782
        %954 = vmatpush1.bf16.msra.mxu0 %v781
        %955 = vmatprep.subr.bf16.mxu0 %v794
        %956 = vmatpush1.bf16.msra.mxu0 %v793
        %957 = vmatprep.subr.bf16.mxu0 %v806
        %958 = vmatpush1.bf16.msra.mxu0 %v805
        %959 = vmatprep.subr.bf16.mxu0 %v818
        %960 = vmatpush1.bf16.msra.mxu0 %v817
        %961 = vmatprep.subr.bf16.mxu0 %v830
        %962 = vmatpush1.bf16.msra.mxu0 %v829
        %963 = vmatprep.subr.bf16.mxu0 %v842
        %964 = vmatpush1.bf16.msra.mxu0 %v841
        %965 = vmatprep.subr.bf16.mxu0 0
        %966 = vmatpush1.bf16.msra.mxu0 0
        %967 = vmatprep.subr.bf16.mxu0 0
        %968 = vmatpush1.bf16.msra.mxu0 0
        %969 = vmatprep.subr.bf16.mxu0 0
        %970 = vmatpush1.bf16.msra.mxu0 0
        %971 = vmatprep.subr.bf16.mxu0 0
        %972 = vmatpush1.bf16.msra.mxu0 0
        %973 = vmatprep.subr.bf16.mxu0 0
        %974 = vmatpush1.bf16.msra.mxu0 0
        %975 = vmatprep.subr.bf16.mxu0 0
        %976 = vmatpush1.bf16.msra.mxu0 0
        %977 = vmatprep.subr.bf16.mxu0 0
        %978 = vmatpush1.bf16.msra.mxu0 0
        %979 = vmatprep.subr.bf16.mxu0 0
        %980 = vmatpush1.bf16.msra.mxu0 0
        %981 = vmatprep.mubr.bf16.mxu0 0
        %982 = vmatmul.mubr.bf16.gmra.mrb[0].mxu0 %v308
        %v983 = vpop.f32.mrb[0].mxu0
        %v984 = vadd.f32 %v412, %v983
        %v985 = vpop.f32.mrb[0].mxu0
        %v986 = vadd.f32 %v416, %v985
        %v987 = vpop.f32.mrb[0].mxu0
        %v988 = vpop.f32.mrb[0].mxu0
        %989 = vdwg.mxu0
        %990 = vmatprep.subr.bf16.mxu0 %v760
        %991 = vmatpush1.bf16.msra.mxu0 %v759
        %992 = vmatprep.subr.bf16.mxu0 %v772
        %993 = vmatpush1.bf16.msra.mxu0 %v771
        %994 = vmatprep.subr.bf16.mxu0 %v784
        %995 = vmatpush1.bf16.msra.mxu0 %v783
        %996 = vmatprep.subr.bf16.mxu0 %v796
        %997 = vmatpush1.bf16.msra.mxu0 %v795
        %998 = vmatprep.subr.bf16.mxu0 %v808
        %999 = vmatpush1.bf16.msra.mxu0 %v807
        %1000 = vmatprep.subr.bf16.mxu0 %v820
        %1001 = vmatpush1.bf16.msra.mxu0 %v819
        %1002 = vmatprep.subr.bf16.mxu0 %v832
        %1003 = vmatpush1.bf16.msra.mxu0 %v831
        %1004 = vmatprep.subr.bf16.mxu0 %v844
        %1005 = vmatpush1.bf16.msra.mxu0 %v843
        %1006 = vmatprep.subr.bf16.mxu0 0
        %1007 = vmatpush1.bf16.msra.mxu0 0
        %1008 = vmatprep.subr.bf16.mxu0 0
        %1009 = vmatpush1.bf16.msra.mxu0 0
        %1010 = vmatprep.subr.bf16.mxu0 0
        %1011 = vmatpush1.bf16.msra.mxu0 0
        %1012 = vmatprep.subr.bf16.mxu0 0
        %1013 = vmatpush1.bf16.msra.mxu0 0
        %1014 = vmatprep.subr.bf16.mxu0 0
        %1015 = vmatpush1.bf16.msra.mxu0 0
        %1016 = vmatprep.subr.bf16.mxu0 0
        %1017 = vmatpush1.bf16.msra.mxu0 0
        %1018 = vmatprep.subr.bf16.mxu0 0
        %1019 = vmatpush1.bf16.msra.mxu0 0
        %1020 = vmatprep.subr.bf16.mxu0 0
        %1021 = vmatpush1.bf16.msra.mxu0 0
        %1022 = vmatprep.mubr.bf16.mxu0 0
        %1023 = vmatmul.mubr.bf16.gmra.mrb[0].mxu0 %v308
        %v1024 = vpop.f32.mrb[0].mxu0
        %v1025 = vadd.f32 %v420, %v1024
        %v1026 = vpop.f32.mrb[0].mxu0
        %v1027 = vadd.f32 %v424, %v1026
        %v1028 = vpop.f32.mrb[0].mxu0
        %v1029 = vpop.f32.mrb[0].mxu0
        %1030 = vdwg.mxu0
        %1031 = vmatprep.subr.bf16.mxu0 %v762
        %1032 = vmatpush1.bf16.msra.mxu0 %v761
        %1033 = vmatprep.subr.bf16.mxu0 %v774
        %1034 = vmatpush1.bf16.msra.mxu0 %v773
        %1035 = vmatprep.subr.bf16.mxu0 %v786
        %1036 = vmatpush1.bf16.msra.mxu0 %v785
        %1037 = vmatprep.subr.bf16.mxu0 %v798
        %1038 = vmatpush1.bf16.msra.mxu0 %v797
        %1039 = vmatprep.subr.bf16.mxu0 %v810
        %1040 = vmatpush1.bf16.msra.mxu0 %v809
        %1041 = vmatprep.subr.bf16.mxu0 %v822
        %1042 = vmatpush1.bf16.msra.mxu0 %v821
        %1043 = vmatprep.subr.bf16.mxu0 %v834
        %1044 = vmatpush1.bf16.msra.mxu0 %v833
        %1045 = vmatprep.subr.bf16.mxu0 %v846
        %1046 = vmatpush1.bf16.msra.mxu0 %v845
        %1047 = vmatprep.subr.bf16.mxu0 0
        %1048 = vmatpush1.bf16.msra.mxu0 0
        %1049 = vmatprep.subr.bf16.mxu0 0
        %1050 = vmatpush1.bf16.msra.mxu0 0
        %1051 = vmatprep.subr.bf16.mxu0 0
        %1052 = vmatpush1.bf16.msra.mxu0 0
        %1053 = vmatprep.subr.bf16.mxu0 0
        %1054 = vmatpush1.bf16.msra.mxu0 0
        %1055 = vmatprep.subr.bf16.mxu0 0
        %1056 = vmatpush1.bf16.msra.mxu0 0
        %1057 = vmatprep.subr.bf16.mxu0 0
        %1058 = vmatpush1.bf16.msra.mxu0 0
        %1059 = vmatprep.subr.bf16.mxu0 0
        %1060 = vmatpush1.bf16.msra.mxu0 0
        %1061 = vmatprep.subr.bf16.mxu0 0
        %1062 = vmatpush1.bf16.msra.mxu0 0
        %1063 = vmatprep.mubr.bf16.mxu0 0
        %1064 = vmatmul.mubr.bf16.gmra.mrb[0].mxu0 %v308
        %v1065 = vpop.f32.mrb[0].mxu0
        %v1066 = vadd.f32 %v428, %v1065
        %v1067 = vpop.f32.mrb[0].mxu0
        %v1068 = vadd.f32 %v432, %v1067
        %v1069 = vpop.f32.mrb[0].mxu0
        %v1070 = vpop.f32.mrb[0].mxu0
        %1071 = vdwg.mxu0
        %1072 = vmatprep.subr.bf16.mxu0 %v764
        %1073 = vmatpush1.bf16.msra.mxu0 %v763
        %1074 = vmatprep.subr.bf16.mxu0 %v776
        %1075 = vmatpush1.bf16.msra.mxu0 %v775
        %1076 = vmatprep.subr.bf16.mxu0 %v788
        %1077 = vmatpush1.bf16.msra.mxu0 %v787
        %1078 = vmatprep.subr.bf16.mxu0 %v800
        %1079 = vmatpush1.bf16.msra.mxu0 %v799
        %1080 = vmatprep.subr.bf16.mxu0 %v812
        %1081 = vmatpush1.bf16.msra.mxu0 %v811
        %1082 = vmatprep.subr.bf16.mxu0 %v824
        %1083 = vmatpush1.bf16.msra.mxu0 %v823
        %1084 = vmatprep.subr.bf16.mxu0 %v836
        %1085 = vmatpush1.bf16.msra.mxu0 %v835
        %1086 = vmatprep.subr.bf16.mxu0 %v848
        %1087 = vmatpush1.bf16.msra.mxu0 %v847
        %1088 = vmatprep.subr.bf16.mxu0 0
        %1089 = vmatpush1.bf16.msra.mxu0 0
        %1090 = vmatprep.subr.bf16.mxu0 0
        %1091 = vmatpush1.bf16.msra.mxu0 0
        %1092 = vmatprep.subr.bf16.mxu0 0
        %1093 = vmatpush1.bf16.msra.mxu0 0
        %1094 = vmatprep.subr.bf16.mxu0 0
        %1095 = vmatpush1.bf16.msra.mxu0 0
        %1096 = vmatprep.subr.bf16.mxu0 0
        %1097 = vmatpush1.bf16.msra.mxu0 0
        %1098 = vmatprep.subr.bf16.mxu0 0
        %1099 = vmatpush1.bf16.msra.mxu0 0
        %1100 = vmatprep.subr.bf16.mxu0 0
        %1101 = vmatpush1.bf16.msra.mxu0 0
        %1102 = vmatprep.subr.bf16.mxu0 0
        %1103 = vmatpush1.bf16.msra.mxu0 0
        %1104 = vmatprep.mubr.bf16.mxu0 0
        %1105 = vmatmul.mubr.bf16.gmra.mrb[0].mxu0 %v308
        %v1106 = vpop.f32.mrb[0].mxu0
        %v1107 = vadd.f32 %v436, %v1106
        %v1108 = vpop.f32.mrb[0].mxu0
        %v1109 = vadd.f32 %v440, %v1108
        %v1110 = vpop.f32.mrb[0].mxu0
        %v1111 = vpop.f32.mrb[0].mxu0
        %1112 = vdwg.mxu0
        %1113 = vmatprep.subr.bf16.mxu0 %v766
        %1114 = vmatpush1.bf16.msra.mxu0 %v765
        %1115 = vmatprep.subr.bf16.mxu0 %v778
        %1116 = vmatpush1.bf16.msra.mxu0 %v777
        %1117 = vmatprep.subr.bf16.mxu0 %v790
        %1118 = vmatpush1.bf16.msra.mxu0 %v789
        %1119 = vmatprep.subr.bf16.mxu0 %v802
        %1120 = vmatpush1.bf16.msra.mxu0 %v801
        %1121 = vmatprep.subr.bf16.mxu0 %v814
        %1122 = vmatpush1.bf16.msra.mxu0 %v813
        %1123 = vmatprep.subr.bf16.mxu0 %v826
        %1124 = vmatpush1.bf16.msra.mxu0 %v825
        %1125 = vmatprep.subr.bf16.mxu0 %v838
        %1126 = vmatpush1.bf16.msra.mxu0 %v837
        %1127 = vmatprep.subr.bf16.mxu0 %v850
        %1128 = vmatpush1.bf16.msra.mxu0 %v849
        %1129 = vmatprep.subr.bf16.mxu0 0
        %1130 = vmatpush1.bf16.msra.mxu0 0
        %1131 = vmatprep.subr.bf16.mxu0 0
        %1132 = vmatpush1.bf16.msra.mxu0 0
        %1133 = vmatprep.subr.bf16.mxu0 0
        %1134 = vmatpush1.bf16.msra.mxu0 0
        %1135 = vmatprep.subr.bf16.mxu0 0
        %1136 = vmatpush1.bf16.msra.mxu0 0
        %1137 = vmatprep.subr.bf16.mxu0 0
        %1138 = vmatpush1.bf16.msra.mxu0 0
        %1139 = vmatprep.subr.bf16.mxu0 0
        %1140 = vmatpush1.bf16.msra.mxu0 0
        %1141 = vmatprep.subr.bf16.mxu0 0
        %1142 = vmatpush1.bf16.msra.mxu0 0
        %1143 = vmatprep.subr.bf16.mxu0 0
        %1144 = vmatpush1.bf16.msra.mxu0 0
        %1145 = vmatprep.mubr.bf16.mxu0 0
        %1146 = vmatmul.mubr.bf16.gmra.mrb[0].mxu0 %v308
        %v1147 = vpop.f32.mrb[0].mxu0
        %v1148 = vadd.f32 %v444, %v1147
        %v1149 = vpop.f32.mrb[0].mxu0
        %v1150 = vadd.f32 %v448, %v1149
        %v1151 = vpop.f32.mrb[0].mxu0
        %v1152 = vpop.f32.mrb[0].mxu0
        %1153 = vdwg.mxu0
        %1154 = vmatprep.subr.bf16.mxu0 %v768
        %1155 = vmatpush1.bf16.msra.mxu0 %v767
        %1156 = vmatprep.subr.bf16.mxu0 %v780
        %1157 = vmatpush1.bf16.msra.mxu0 %v779
        %1158 = vmatprep.subr.bf16.mxu0 %v792
        %1159 = vmatpush1.bf16.msra.mxu0 %v791
        %1160 = vmatprep.subr.bf16.mxu0 %v804
        %1161 = vmatpush1.bf16.msra.mxu0 %v803
        %1162 = vmatprep.subr.bf16.mxu0 %v816
        %1163 = vmatpush1.bf16.msra.mxu0 %v815
        %1164 = vmatprep.subr.bf16.mxu0 %v828
        %1165 = vmatpush1.bf16.msra.mxu0 %v827
        %1166 = vmatprep.subr.bf16.mxu0 %v840
        %1167 = vmatpush1.bf16.msra.mxu0 %v839
        %1168 = vmatprep.subr.bf16.mxu0 %v852
        %1169 = vmatpush1.bf16.msra.mxu0 %v851
        %1170 = vmatprep.subr.bf16.mxu0 0
        %1171 = vmatpush1.bf16.msra.mxu0 0
        %1172 = vmatprep.subr.bf16.mxu0 0
        %1173 = vmatpush1.bf16.msra.mxu0 0
        %1174 = vmatprep.subr.bf16.mxu0 0
        %1175 = vmatpush1.bf16.msra.mxu0 0
        %1176 = vmatprep.subr.bf16.mxu0 0
        %1177 = vmatpush1.bf16.msra.mxu0 0
        %1178 = vmatprep.subr.bf16.mxu0 0
        %1179 = vmatpush1.bf16.msra.mxu0 0
        %1180 = vmatprep.subr.bf16.mxu0 0
        %1181 = vmatpush1.bf16.msra.mxu0 0
        %1182 = vmatprep.subr.bf16.mxu0 0
        %1183 = vmatpush1.bf16.msra.mxu0 0
        %1184 = vmatprep.subr.bf16.mxu0 0
        %1185 = vmatpush1.bf16.msra.mxu0 0
        %1186 = vmatprep.mubr.bf16.mxu0 0
        %1187 = vmatmul.mubr.bf16.gmra.mrb[0].mxu0 %v308
        %v1188 = vpop.f32.mrb[0].mxu0
        %v1189 = vadd.f32 %v452, %v1188
        %v1190 = vpop.f32.mrb[0].mxu0
        %v1191 = vadd.f32 %v456, %v1190
        %v1192 = vpop.f32.mrb[0].mxu0
        %v1193 = vpop.f32.mrb[0].mxu0
        %1194 = vdwg.mxu0
        %v1195 = vpack.c.bf16 %v984, %v984
        %v1196 = vpack.c.bf16 %v986, %v986
        %v1197 = vpack.c.bf16 %v1025, %v1025
        %v1198 = vpack.c.bf16 %v1027, %v1027
        %v1199 = vpack.c.bf16 %v1066, %v1066
        %v1200 = vpack.c.bf16 %v1068, %v1068
        %v1201 = vpack.c.bf16 %v1107, %v1107
        %v1202 = vpack.c.bf16 %v1109, %v1109
        %v1203 = vpack.c.bf16 %v1148, %v1148
        %v1204 = vpack.c.bf16 %v1150, %v1150
        %v1205 = vpack.c.bf16 %v1189, %v1189
        %v1206 = vpack.c.bf16 %v1191, %v1191
        %1207 = vst [vmem:[%s292] sm:$0xf] %v1195
        %1208 = vst [vmem:[%s299] sm:$0xf] %v1199
        %1209 = vst [vmem:[%s306] sm:$0xf] %v1203
        %s1210 = scalar_lea.vmem %s292, 4 [#allocation8]
        %1211 = vst [vmem:[%s1210] sm:$0xf] %v1196
        %s1212 = scalar_lea.vmem %s299, 4 [#allocation9]
        %1213 = vst [vmem:[%s1212] sm:$0xf] %v1200
        %s1214 = scalar_lea.vmem %s306, 4 [#allocation11]
        %1215 = vst [vmem:[%s1214] sm:$0xf] %v1204
        %s1216 = scalar_lea.vmem %s292, 8 [#allocation8]
        %1217 = vst [vmem:[%s1216] sm:$0xf] %v1197
        %s1218 = scalar_lea.vmem %s299, 8 [#allocation9]
        %1219 = vst [vmem:[%s1218] sm:$0xf] %v1201
        %s1220 = scalar_lea.vmem %s306, 8 [#allocation11]
        %1221 = vst [vmem:[%s1220] sm:$0xf] %v1205
        %s1222 = scalar_lea.vmem %s292, 12 [#allocation8]
        %1223 = vst [vmem:[%s1222] sm:$0xf] %v1198
        %s1224 = scalar_lea.vmem %s299, 12 [#allocation9]
        %1225 = vst [vmem:[%s1224] sm:$0xf] %v1202
        %s1226 = scalar_lea.vmem %s306, 12 [#allocation11]
        %1227 = vst [vmem:[%s1226] sm:$0xf] %v1206
        %s1228 = sand.u32 %s119, 1
        %s1229 = scalar_lea.sflag [#allocation4], %s1228
        %s1230 = sand.u32 %s119, 1
        %s1231 = smul.addr %s1230, 16
        %s1232 = scalar_lea.vmem [#allocation8], %s1231
        %s1233 = sand.u32 %s27, 1
        %s1234 = scalar_lea.sflag [#allocation10], %s1233
        %s1235 = sand.u32 %s147, 1
        %s1236 = smul.addr %s1235, 16
        %s1237 = scalar_lea.vmem [#allocation9], %s1236
        %s1238 = sand.u32 %s27, 1
        %s1239 = scalar_lea.sflag [#allocation10], %s1238
        %s1240 = sand.u32 %s175, 1
        %s1241 = smul.addr %s1240, 16
        %s1242 = scalar_lea.vmem [#allocation11], %s1241
        // Predicated region
        $region45: #{tpu_custom_call.1} parent=31 // pred_check
          %p1243 = pneg %p129
        $region46: #{tpu_custom_call.1} parent=31 // pred_check_branch
          %1245 = sbr.rel (%p1243) target = $region48
        $region47: #{tpu_custom_call.1} parent=31 // pred_region
          %s1247 = ssub.s32 256, 256
          %1248 = vsyncadd %s1229, %s1247
          %s1249 = smul.addr %s31, 8
          %s1250 = sadd.s32 %s32, %s1249
          %s1251 = smul.addr %s1250, 64
          %s1252 = scalar_lea.hbm %s3, %s1251
          %s1253 = sshll.u32 %s1232, 4
          %s1254 = int_to_ptr.vmem [resolvable:$true] %s1253
          %1259 = dma.vmem_to_hbm [thread:$0]  %s1254, 256, %s1252, %s1229, 64, 128, 4
        $region48: #{tpu_custom_call.1} parent=31 // pred_fallthru
          _
        // Predicated region
        $region49: #{tpu_custom_call.1} parent=31 // pred_check
          %p1260 = pneg %p157
        $region50: #{tpu_custom_call.1} parent=31 // pred_check_branch
          %1262 = sbr.rel (%p1260) target = $region52
        $region51: #{tpu_custom_call.1} parent=31 // pred_region
          %s1264 = ssub.s32 256, 256
          %1265 = vsyncadd %s1234, %s1264
          %s1266 = smul.addr %s31, 8
          %s1267 = sadd.s32 %s32, %s1266
          %s1268 = smul.addr %s1267, 64
          %s1269 = scalar_lea.hbm %s4, %s1268
          %s1270 = sshll.u32 %s1237, 4
          %s1271 = int_to_ptr.vmem [resolvable:$true] %s1270
          %1276 = dma.vmem_to_hbm [thread:$0]  %s1271, 256, %s1269, %s1234, 64, 128, 4
        $region52: #{tpu_custom_call.1} parent=31 // pred_fallthru
          _
        // Predicated region
        $region53: #{tpu_custom_call.1} parent=31 // pred_check
          %p1277 = pneg %p185
        $region54: #{tpu_custom_call.1} parent=31 // pred_check_branch
          %1279 = sbr.rel (%p1277) target = $region56
        $region55: #{tpu_custom_call.1} parent=31 // pred_region
          %s1281 = ssub.s32 256, 256
          %1282 = vsyncadd %s1239, %s1281
          %s1283 = smul.addr %s31, 8
          %s1284 = sadd.s32 %s32, %s1283
          %s1285 = smul.addr %s1284, 64
          %s1286 = scalar_lea.hbm %s5, %s1285
          %s1287 = sshll.u32 %s1242, 4
          %s1288 = int_to_ptr.vmem [resolvable:$true] %s1287
          %1293 = dma.vmem_to_hbm [thread:$0]  %s1288, 256, %s1286, %s1239, 64, 128, 4
        $region56: #{tpu_custom_call.1} parent=31 // pred_fallthru
          _
      $region32: #{tpu_custom_call.1} parent=5 // pred_fallthru
        _
      %p1294 = scmp.le.s32.totalorder 2, %s22
      // Predicated region
      $region57: #{tpu_custom_call.1} parent=5 // pred_check
        %p1295 = pneg %p1294
      $region58: #{tpu_custom_call.1} parent=5 // pred_check_branch
        %1297 = sbr.rel (%p1295) target = $region60
      $region59: #{tpu_custom_call.1} parent=5 // pred_region
        %s1298 = ssub.s32 %s22, 2
        // Predicated region
        $region61: #{tpu_custom_call.1} parent=59 // pred_check
          %p1299 = pneg %p135
        $region62: #{tpu_custom_call.1} parent=59 // pred_check_branch
          %1301 = sbr.rel (%p1299) target = $region64
        $region63: #{tpu_custom_call.1} parent=59 // pred_region
          %s1302 = sand.u32 %s120, 1
          %s1303 = scalar_lea.sflag [#allocation4], %s1302
          %s1304 = sand.u32 %s120, 1
          %s1305 = smul.addr %s1304, 16
          %s1306 = scalar_lea.vmem [#allocation8], %s1305
          %1307 = dma.done %s1303, 256
        $region64: #{tpu_custom_call.1} parent=59 // pred_fallthru
          _
        // Predicated region
        $region65: #{tpu_custom_call.1} parent=59 // pred_check
          %p1308 = pneg %p163
        $region66: #{tpu_custom_call.1} parent=59 // pred_check_branch
          %1310 = sbr.rel (%p1308) target = $region68
        $region67: #{tpu_custom_call.1} parent=59 // pred_region
          %s1311 = sand.u32 %s28, 1
          %s1312 = scalar_lea.sflag [#allocation10], %s1311
          %s1313 = sand.u32 %s148, 1
          %s1314 = smul.addr %s1313, 16
          %s1315 = scalar_lea.vmem [#allocation9], %s1314
          %1316 = dma.done %s1312, 256
        $region68: #{tpu_custom_call.1} parent=59 // pred_fallthru
          _
        // Predicated region
        $region69: #{tpu_custom_call.1} parent=59 // pred_check
          %p1317 = pneg %p191
        $region70: #{tpu_custom_call.1} parent=59 // pred_check_branch
          %1319 = sbr.rel (%p1317) target = $region72
        $region71: #{tpu_custom_call.1} parent=59 // pred_region
          %s1320 = sand.u32 %s28, 1
          %s1321 = scalar_lea.sflag [#allocation10], %s1320
          %s1322 = sand.u32 %s176, 1
          %s1323 = smul.addr %s1322, 16
          %s1324 = scalar_lea.vmem [#allocation11], %s1323
          %1325 = dma.done %s1321, 256
        $region72: #{tpu_custom_call.1} parent=59 // pred_fallthru
          _
      $region60: #{tpu_custom_call.1} parent=5 // pred_fallthru
        _
    $region6: #{tpu_custom_call.1} parent=1 // loop_footer
      %s26 = sadd.s32 1, %s22
    $region7: #{tpu_custom_call.1} parent=1 // loop_footer_branch
      %21 = sbr.rel target = $region3
    $region8: #{tpu_custom_call.1} parent=1 // loop_exit
      _
    %1326 = vsyncpa [#allocation3], 1
    %s1327 = scalar_lea.sflag [#allocation3], 1
    %1328 = vsyncpa %s1327, 1
    %1329 = vsyncpa [#allocation6], 1
    %1330 = vsyncpa [#allocation4], 1
    %s1331 = scalar_lea.sflag [#allocation4], 1
    %1332 = vsyncpa %s1331, 1
    %1333 = vsyncpa [#allocation10], 1
    %s1334 = scalar_lea.sflag [#allocation10], 1
    %1335 = vsyncpa %s1334, 1

</llo_original>
